<compile_context>
chip_gen: v7x
topology: tpu7x:2x2x1
jax: 0.10.0
libtpu: 0.0.40
codegen_flags: <defaults>
</compile_context>

<pallas_src>
import math
import functools

import jax
import jax.numpy as jnp
from jax.experimental import pallas as pl
from jax.experimental.pallas import tpu as pltpu


# ---------------------------------------------------------------------------
# Fused MHA kernel: one program for the whole forward pass.
# ---------------------------------------------------------------------------
def _mha_fused_kernel(xq_ref, xk_ref, xv_ref,
                      wqkv_ref, bqkv_ref, wo_ref, bo_ref,
                      o_ref, vals_ref,
                      *, batch, seq_q, seq_kv, num_heads, head_dim, scale):
    E = num_heads * head_dim

    wqkv = wqkv_ref[...]                      # (IN, 3E) packed [wq|wk|wv]
    bqkv = bqkv_ref[...]                      # (1, 3E)  packed [bq|bk|bv]

    # --- fused Q/K/V projections (M = B*S rows, lane dim = embed_dim) -------
    # scale is folded into qp once (full-tile VALU pass), equivalent to
    # dividing the logits by sqrt(head_dim).
    qp = (jnp.dot(xq_ref[...], wqkv[:, 0:E],
                  preferred_element_type=jnp.float32) + bqkv[:, 0:E]) * scale
    kp = (jnp.dot(xk_ref[...], wqkv[:, E:2 * E],
                  preferred_element_type=jnp.float32) + bqkv[:, E:2 * E])
    vp = (jnp.dot(xv_ref[...], wqkv[:, 2 * E:3 * E],
                  preferred_element_type=jnp.float32) + bqkv[:, 2 * E:3 * E])

    # restore the per-batch view for attention (sublane-tile-aligned reshape)
    qp3 = qp.reshape(batch, seq_q, E)
    kp3 = kp.reshape(batch, seq_kv, E)
    vp3 = vp.reshape(batch, seq_kv, E)

    # --- per-head scaled dot-product attention ------------------------------
    # One batched dot_general per head (batched over the batch dim), head
    # outputs written straight into a VMEM scratch tile at static lane
    # offsets (no concatenate).
    for h in range(num_heads):                # static loop, H small
        lo = h * head_dim
        qh = qp3[:, :, lo:lo + head_dim]      # (B, Sq, Dh)
        kh = kp3[:, :, lo:lo + head_dim]      # (B, Skv, Dh)
        vh = vp3[:, :, lo:lo + head_dim]      # (B, Skv, Dh)

        logits = jnp.einsum('bqd,bkd->bqk', qh, kh,
                            preferred_element_type=jnp.float32)  # (B, Sq, Skv)
        m = jnp.max(logits, axis=-1, keepdims=True)
        p = jnp.exp(logits - m)
        denom = jnp.sum(p, axis=-1, keepdims=True)
        attn = p / denom                      # exact reciprocal (bit-accurate softmax)

        out_h = jnp.einsum('bqk,bkd->bqd', attn, vh,
                           preferred_element_type=jnp.float32)   # (B, Sq, Dh)
        vals_ref[:, lo:lo + head_dim] = out_h.reshape(batch * seq_q, head_dim)

    # --- output projection, single lane-dense store -------------------------
    o_ref[...] = (jnp.dot(vals_ref[...], wo_ref[...],
                          preferred_element_type=jnp.float32) + bo_ref[...])


# ---------------------------------------------------------------------------
# Wrapper
# ---------------------------------------------------------------------------
def multihead_attention_forward(params, q, k, v, num_heads):
    B, Sq, IN = q.shape
    _, Skv, _ = k.shape
    E = params["wq"].shape[1]
    head_dim = E // num_heads

    # pack QKV weights/biases -> single refs (fewer DMA descriptors per step)
    wqkv = jnp.concatenate([params["wq"], params["wk"], params["wv"]], axis=1)  # (IN, 3E)
    bqkv = jnp.concatenate([params["bq"], params["bk"], params["bv"]]).reshape(1, 3 * E)
    wo = params["wo"]
    bo = params["bo"].reshape(1, E)

    # collapse batch into the matmul M dimension (lane-dense 2-D activations)
    xq = q.reshape(B * Sq, IN)
    xk = k.reshape(B * Skv, IN)
    xv = v.reshape(B * Skv, IN)

    kernel = functools.partial(
        _mha_fused_kernel, batch=B, seq_q=Sq, seq_kv=Skv,
        num_heads=num_heads, head_dim=head_dim, scale=1.0 / math.sqrt(head_dim))

    flops = (2 * B * Sq * IN * E            # q proj
             + 4 * B * Skv * IN * E         # k, v proj
             + 4 * B * num_heads * Sq * Skv * head_dim  # qk^T + attn@v
             + 2 * B * Sq * E * E)          # o proj
    bytes_accessed = 4 * (B * Sq * IN + 2 * B * Skv * IN
                          + IN * 3 * E + 3 * E + E * E + E + B * Sq * E)

    out2d = pl.pallas_call(
        kernel,
        out_shape=jax.ShapeDtypeStruct((B * Sq, E), jnp.float32),
        grid=(1,),
        in_specs=[
            pl.BlockSpec((B * Sq, IN), lambda i: (0, 0)),    # q rows
            pl.BlockSpec((B * Skv, IN), lambda i: (0, 0)),   # k rows
            pl.BlockSpec((B * Skv, IN), lambda i: (0, 0)),   # v rows
            pl.BlockSpec((IN, 3 * E), lambda i: (0, 0)),     # packed wqkv
            pl.BlockSpec((1, 3 * E), lambda i: (0, 0)),      # packed bqkv
            pl.BlockSpec((E, E), lambda i: (0, 0)),          # wo
            pl.BlockSpec((1, E), lambda i: (0, 0)),          # bo
        ],
        out_specs=pl.BlockSpec((B * Sq, E), lambda i: (0, 0)),
        scratch_shapes=[pltpu.VMEM((B * Sq, E), jnp.float32)],  # merged head outs
        compiler_params=pltpu.CompilerParams(
            dimension_semantics=("arbitrary",)),
        cost_estimate=pl.CostEstimate(
            flops=flops,
            transcendentals=B * num_heads * Sq * Skv,
            bytes_accessed=bytes_accessed),
    )(xq, xk, xv, wqkv, bqkv, wo, bo)

    return out2d.reshape(B, Sq, E)


# ---------------------------------------------------------------------------
# Parameter init (matches nn.Linear + xavier_uniform_ of the PyTorch module)
# ---------------------------------------------------------------------------
def xavier_uniform(key, fan_in, fan_out):
    limit = math.sqrt(6.0 / (fan_in + fan_out))
    # stored as (in, out) so forward is x @ W (+ b); equivalent to torch x @ W.T
    return jax.random.uniform(
        key, (fan_in, fan_out), minval=-limit, maxval=limit, dtype=jnp.float32)


def init_mha_params(key, input_dim, embed_dim):
    ks = jax.random.split(key, 8)
    bound_in = 1.0 / math.sqrt(input_dim)
    bound_emb = 1.0 / math.sqrt(embed_dim)
    return {
        "wq": xavier_uniform(ks[0], input_dim, embed_dim),
        "bq": jax.random.uniform(ks[1], (embed_dim,), minval=-bound_in, maxval=bound_in),
        "wk": xavier_uniform(ks[2], input_dim, embed_dim),
        "bk": jax.random.uniform(ks[3], (embed_dim,), minval=-bound_in, maxval=bound_in),
        "wv": xavier_uniform(ks[4], input_dim, embed_dim),
        "bv": jax.random.uniform(ks[5], (embed_dim,), minval=-bound_in, maxval=bound_in),
        "wo": xavier_uniform(ks[6], embed_dim, embed_dim),
        "bo": jax.random.uniform(ks[7], (embed_dim,), minval=-bound_emb, maxval=bound_emb),
    }


# pure-JAX reference for validation (mirrors the PyTorch forward, mask=None)
def reference_forward(params, q, k, v, num_heads):
    B, Sq, _ = q.shape
    _, Skv, _ = k.shape
    embed_dim = params["wq"].shape[1]
    head_dim = embed_dim // num_heads
    qp = q @ params["wq"] + params["bq"]
    kp = k @ params["wk"] + params["bk"]
    vp = v @ params["wv"] + params["bv"]
    qh = qp.reshape(B, Sq, num_heads, head_dim).transpose(0, 2, 1, 3)
    kh = kp.reshape(B, Skv, num_heads, head_dim).transpose(0, 2, 1, 3)
    vh = vp.reshape(B, Skv, num_heads, head_dim).transpose(0, 2, 1, 3)
    logits = jnp.einsum("bhqd,bhkd->bhqk", qh, kh) / math.sqrt(head_dim)
    attn = jax.nn.softmax(logits, axis=-1)
    vals = jnp.einsum("bhqk,bhkd->bhqd", attn, vh)
    vals = vals.transpose(0, 2, 1, 3).reshape(B, Sq, embed_dim)
    return vals @ params["wo"] + params["bo"]


if __name__ == "__main__":
    B, S, INPUT_DIM, EMBED_DIM, NUM_HEADS = 2, 8, 32, 32, 4

    key = jax.random.PRNGKey(0)
    kp_, kq_, kk_, kv_ = jax.random.split(key, 4)
    params = init_mha_params(kp_, INPUT_DIM, EMBED_DIM)
    q = jax.random.normal(kq_, (B, S, INPUT_DIM), dtype=jnp.float32)
    k = jax.random.normal(kk_, (B, S, INPUT_DIM), dtype=jnp.float32)
    v = jax.random.normal(kv_, (B, S, INPUT_DIM), dtype=jnp.float32)

    out = multihead_attention_forward(params, q, k, v, NUM_HEADS)
    out = jax.block_until_ready(out)

    ref = reference_forward(params, q, k, v, NUM_HEADS)
    assert out.shape == (B, S, EMBED_DIM)
    max_err = float(jnp.max(jnp.abs(out - ref)))
    assert jnp.allclose(out, ref, atol=1e-4, rtol=1e-4), \
        f"mismatch vs reference (max err {max_err})"

    print("KERNEL_OK")
</pallas_src>

<mosaic_0001>
module attributes {stable_mosaic.version = 11 : i64} {
  func.func @_mha_fused_kernel(%arg0: i32, %arg1: memref<16x32xf32, #tpu.memory_space<vmem>>, %arg2: memref<16x32xf32, #tpu.memory_space<vmem>>, %arg3: memref<16x32xf32, #tpu.memory_space<vmem>>, %arg4: memref<32x96xf32, #tpu.memory_space<vmem>>, %arg5: memref<1x96xf32, #tpu.memory_space<vmem>>, %arg6: memref<32x32xf32, #tpu.memory_space<vmem>>, %arg7: memref<1x32xf32, #tpu.memory_space<vmem>>, %arg8: memref<16x32xf32, #tpu.memory_space<vmem>>, %arg9: memref<16x32xf32, #tpu.memory_space<vmem>>) attributes {dimension_semantics = [#tpu.dimension_semantics<arbitrary>], iteration_bounds = array<i64: 1>, scalar_prefetch = 0 : i64, scratch_operands = 1 : i64, tpu.core_type = #tpu.core_type<tc>, window_params = [{pipeline_mode = #tpu.pipeline_mode<synchronous>, transform_indices = @transform_0, window_bounds = array<i64: 16, 32>}, {pipeline_mode = #tpu.pipeline_mode<synchronous>, transform_indices = @transform_1, window_bounds = array<i64: 16, 32>}, {pipeline_mode = #tpu.pipeline_mode<synchronous>, transform_indices = @transform_2, window_bounds = array<i64: 16, 32>}, {pipeline_mode = #tpu.pipeline_mode<synchronous>, transform_indices = @transform_3, window_bounds = array<i64: 32, 96>}, {pipeline_mode = #tpu.pipeline_mode<synchronous>, transform_indices = @transform_4, window_bounds = array<i64: 1, 96>}, {pipeline_mode = #tpu.pipeline_mode<synchronous>, transform_indices = @transform_5, window_bounds = array<i64: 32, 32>}, {pipeline_mode = #tpu.pipeline_mode<synchronous>, transform_indices = @transform_6, window_bounds = array<i64: 1, 32>}, {pipeline_mode = #tpu.pipeline_mode<synchronous>, transform_indices = @transform_7, window_bounds = array<i64: 16, 32>}]} {
    %c0 = arith.constant 0 : index
    %c0_0 = arith.constant 0 : index
    %0 = vector.load %arg4[%c0, %c0_0] : memref<32x96xf32, #tpu.memory_space<vmem>>, vector<32x96xf32>
    %c0_1 = arith.constant 0 : index
    %c0_2 = arith.constant 0 : index
    %1 = vector.load %arg5[%c0_1, %c0_2] : memref<1x96xf32, #tpu.memory_space<vmem>>, vector<1x96xf32>
    %c0_3 = arith.constant 0 : index
    %c0_4 = arith.constant 0 : index
    %2 = vector.load %arg1[%c0_3, %c0_4] : memref<16x32xf32, #tpu.memory_space<vmem>>, vector<16x32xf32>
    %3 = vector.extract_strided_slice %0 {offsets = [0, 0], sizes = [32, 32], strides = [1, 1]} : vector<32x96xf32> to vector<32x32xf32>
    %cst = arith.constant dense<0.000000e+00> : vector<16x32xf32>
    %4 = tpu.matmul %2, %3, %cst {dimension_numbers = #tpu.dot_dimension_numbers<[1], [0], [0], [1], [0, 0, 1, 1], [], []>} : vector<16x32xf32>, vector<32x32xf32>, vector<16x32xf32> -> vector<16x32xf32>
    %5 = vector.extract_strided_slice %1 {offsets = [0, 0], sizes = [1, 32], strides = [1, 1]} : vector<1x96xf32> to vector<1x32xf32>
    %6 = vector.broadcast %5 : vector<1x32xf32> to vector<16x32xf32>
    %7 = arith.addf %4, %6 : vector<16x32xf32>
    %cst_5 = arith.constant 0.353553385 : f32
    %8 = vector.broadcast %cst_5 : f32 to vector<16x32xf32>
    %9 = arith.mulf %7, %8 : vector<16x32xf32>
    %c0_6 = arith.constant 0 : index
    %c0_7 = arith.constant 0 : index
    %10 = vector.load %arg2[%c0_6, %c0_7] : memref<16x32xf32, #tpu.memory_space<vmem>>, vector<16x32xf32>
    %11 = vector.extract_strided_slice %0 {offsets = [0, 32], sizes = [32, 32], strides = [1, 1]} : vector<32x96xf32> to vector<32x32xf32>
    %cst_8 = arith.constant dense<0.000000e+00> : vector<16x32xf32>
    %12 = tpu.matmul %10, %11, %cst_8 {dimension_numbers = #tpu.dot_dimension_numbers<[1], [0], [0], [1], [0, 0, 1, 1], [], []>} : vector<16x32xf32>, vector<32x32xf32>, vector<16x32xf32> -> vector<16x32xf32>
    %13 = vector.extract_strided_slice %1 {offsets = [0, 32], sizes = [1, 32], strides = [1, 1]} : vector<1x96xf32> to vector<1x32xf32>
    %14 = vector.broadcast %13 : vector<1x32xf32> to vector<16x32xf32>
    %15 = arith.addf %12, %14 : vector<16x32xf32>
    %c0_9 = arith.constant 0 : index
    %c0_10 = arith.constant 0 : index
    %16 = vector.load %arg3[%c0_9, %c0_10] : memref<16x32xf32, #tpu.memory_space<vmem>>, vector<16x32xf32>
    %17 = vector.extract_strided_slice %0 {offsets = [0, 64], sizes = [32, 32], strides = [1, 1]} : vector<32x96xf32> to vector<32x32xf32>
    %cst_11 = arith.constant dense<0.000000e+00> : vector<16x32xf32>
    %18 = tpu.matmul %16, %17, %cst_11 {dimension_numbers = #tpu.dot_dimension_numbers<[1], [0], [0], [1], [0, 0, 1, 1], [], []>} : vector<16x32xf32>, vector<32x32xf32>, vector<16x32xf32> -> vector<16x32xf32>
    %19 = vector.extract_strided_slice %1 {offsets = [0, 64], sizes = [1, 32], strides = [1, 1]} : vector<1x96xf32> to vector<1x32xf32>
    %20 = vector.broadcast %19 : vector<1x32xf32> to vector<16x32xf32>
    %21 = arith.addf %18, %20 : vector<16x32xf32>
    %22 = vector.shape_cast %9 : vector<16x32xf32> to vector<2x8x32xf32>
    %23 = vector.shape_cast %15 : vector<16x32xf32> to vector<2x8x32xf32>
    %24 = vector.shape_cast %21 : vector<16x32xf32> to vector<2x8x32xf32>
    %25 = vector.extract_strided_slice %22 {offsets = [0, 0, 0], sizes = [2, 8, 8], strides = [1, 1, 1]} : vector<2x8x32xf32> to vector<2x8x8xf32>
    %26 = vector.extract_strided_slice %23 {offsets = [0, 0, 0], sizes = [2, 8, 8], strides = [1, 1, 1]} : vector<2x8x32xf32> to vector<2x8x8xf32>
    %27 = vector.extract_strided_slice %24 {offsets = [0, 0, 0], sizes = [2, 8, 8], strides = [1, 1, 1]} : vector<2x8x32xf32> to vector<2x8x8xf32>
    "tpu.trace_start"() <{level = 10 : i32, message = "bqd,bkd->bqk"}> : () -> ()
    %cst_12 = arith.constant dense<0.000000e+00> : vector<2x8x8xf32>
    %28 = tpu.matmul %25, %26, %cst_12 {dimension_numbers = #tpu.dot_dimension_numbers<[2], [2], [1], [1], [0, 0, 0, 1, 1, 1], [0], [0]>} : vector<2x8x8xf32>, vector<2x8x8xf32>, vector<2x8x8xf32> -> vector<2x8x8xf32>
    "tpu.trace_stop"() : () -> ()
    %cst_13 = arith.constant dense<0xFF800000> : vector<2x8xf32>
    %29 = vector.multi_reduction <maximumf>, %28, %cst_13 [2] : vector<2x8x8xf32> to vector<2x8xf32>
    %30 = vector.shape_cast %29 : vector<2x8xf32> to vector<2x8x1xf32>
    %31 = vector.broadcast %30 : vector<2x8x1xf32> to vector<2x8x8xf32>
    %32 = arith.subf %28, %31 : vector<2x8x8xf32>
    %33 = math.exp %32 : vector<2x8x8xf32>
    %cst_14 = arith.constant dense<0.000000e+00> : vector<2x8xf32>
    %34 = vector.multi_reduction <add>, %33, %cst_14 [2] : vector<2x8x8xf32> to vector<2x8xf32>
    %35 = vector.shape_cast %34 : vector<2x8xf32> to vector<2x8x1xf32>
    %36 = vector.broadcast %35 : vector<2x8x1xf32> to vector<2x8x8xf32>
    %37 = arith.divf %33, %36 : vector<2x8x8xf32>
    "tpu.trace_start"() <{level = 10 : i32, message = "bqk,bkd->bqd"}> : () -> ()
    %cst_15 = arith.constant dense<0.000000e+00> : vector<2x8x8xf32>
    %38 = tpu.matmul %37, %27, %cst_15 {dimension_numbers = #tpu.dot_dimension_numbers<[2], [1], [1], [2], [0, 0, 0, 1, 1, 2], [0], [0]>} : vector<2x8x8xf32>, vector<2x8x8xf32>, vector<2x8x8xf32> -> vector<2x8x8xf32>
    "tpu.trace_stop"() : () -> ()
    %39 = vector.shape_cast %38 : vector<2x8x8xf32> to vector<16x8xf32>
    %c0_16 = arith.constant 0 : index
    %c0_17 = arith.constant 0 : index
    %40 = vector.load %arg9[%c0_16, %c0_17] : memref<16x32xf32, #tpu.memory_space<vmem>>, vector<16x8xf32>
    tpu.vector_store %arg9[%c0_16, %c0_17], %39 {strides = array<i32>} : memref<16x32xf32, #tpu.memory_space<vmem>>, vector<16x8xf32>,
    %41 = vector.extract_strided_slice %22 {offsets = [0, 0, 8], sizes = [2, 8, 8], strides = [1, 1, 1]} : vector<2x8x32xf32> to vector<2x8x8xf32>
    %42 = vector.extract_strided_slice %23 {offsets = [0, 0, 8], sizes = [2, 8, 8], strides = [1, 1, 1]} : vector<2x8x32xf32> to vector<2x8x8xf32>
    %43 = vector.extract_strided_slice %24 {offsets = [0, 0, 8], sizes = [2, 8, 8], strides = [1, 1, 1]} : vector<2x8x32xf32> to vector<2x8x8xf32>
    "tpu.trace_start"() <{level = 10 : i32, message = "bqd,bkd->bqk"}> : () -> ()
    %cst_18 = arith.constant dense<0.000000e+00> : vector<2x8x8xf32>
    %44 = tpu.matmul %41, %42, %cst_18 {dimension_numbers = #tpu.dot_dimension_numbers<[2], [2], [1], [1], [0, 0, 0, 1, 1, 1], [0], [0]>} : vector<2x8x8xf32>, vector<2x8x8xf32>, vector<2x8x8xf32> -> vector<2x8x8xf32>
    "tpu.trace_stop"() : () -> ()
    %cst_19 = arith.constant dense<0xFF800000> : vector<2x8xf32>
    %45 = vector.multi_reduction <maximumf>, %44, %cst_19 [2] : vector<2x8x8xf32> to vector<2x8xf32>
    %46 = vector.shape_cast %45 : vector<2x8xf32> to vector<2x8x1xf32>
    %47 = vector.broadcast %46 : vector<2x8x1xf32> to vector<2x8x8xf32>
    %48 = arith.subf %44, %47 : vector<2x8x8xf32>
    %49 = math.exp %48 : vector<2x8x8xf32>
    %cst_20 = arith.constant dense<0.000000e+00> : vector<2x8xf32>
    %50 = vector.multi_reduction <add>, %49, %cst_20 [2] : vector<2x8x8xf32> to vector<2x8xf32>
    %51 = vector.shape_cast %50 : vector<2x8xf32> to vector<2x8x1xf32>
    %52 = vector.broadcast %51 : vector<2x8x1xf32> to vector<2x8x8xf32>
    %53 = arith.divf %49, %52 : vector<2x8x8xf32>
    "tpu.trace_start"() <{level = 10 : i32, message = "bqk,bkd->bqd"}> : () -> ()
    %cst_21 = arith.constant dense<0.000000e+00> : vector<2x8x8xf32>
    %54 = tpu.matmul %53, %43, %cst_21 {dimension_numbers = #tpu.dot_dimension_numbers<[2], [1], [1], [2], [0, 0, 0, 1, 1, 2], [0], [0]>} : vector<2x8x8xf32>, vector<2x8x8xf32>, vector<2x8x8xf32> -> vector<2x8x8xf32>
    "tpu.trace_stop"() : () -> ()
    %55 = vector.shape_cast %54 : vector<2x8x8xf32> to vector<16x8xf32>
    %c0_22 = arith.constant 0 : index
    %c8 = arith.constant 8 : index
    %56 = vector.load %arg9[%c0_22, %c8] : memref<16x32xf32, #tpu.memory_space<vmem>>, vector<16x8xf32>
    tpu.vector_store %arg9[%c0_22, %c8], %55 {strides = array<i32>} : memref<16x32xf32, #tpu.memory_space<vmem>>, vector<16x8xf32>,
    %57 = vector.extract_strided_slice %22 {offsets = [0, 0, 16], sizes = [2, 8, 8], strides = [1, 1, 1]} : vector<2x8x32xf32> to vector<2x8x8xf32>
    %58 = vector.extract_strided_slice %23 {offsets = [0, 0, 16], sizes = [2, 8, 8], strides = [1, 1, 1]} : vector<2x8x32xf32> to vector<2x8x8xf32>
    %59 = vector.extract_strided_slice %24 {offsets = [0, 0, 16], sizes = [2, 8, 8], strides = [1, 1, 1]} : vector<2x8x32xf32> to vector<2x8x8xf32>
    "tpu.trace_start"() <{level = 10 : i32, message = "bqd,bkd->bqk"}> : () -> ()
    %cst_23 = arith.constant dense<0.000000e+00> : vector<2x8x8xf32>
    %60 = tpu.matmul %57, %58, %cst_23 {dimension_numbers = #tpu.dot_dimension_numbers<[2], [2], [1], [1], [0, 0, 0, 1, 1, 1], [0], [0]>} : vector<2x8x8xf32>, vector<2x8x8xf32>, vector<2x8x8xf32> -> vector<2x8x8xf32>
    "tpu.trace_stop"() : () -> ()
    %cst_24 = arith.constant dense<0xFF800000> : vector<2x8xf32>
    %61 = vector.multi_reduction <maximumf>, %60, %cst_24 [2] : vector<2x8x8xf32> to vector<2x8xf32>
    %62 = vector.shape_cast %61 : vector<2x8xf32> to vector<2x8x1xf32>
    %63 = vector.broadcast %62 : vector<2x8x1xf32> to vector<2x8x8xf32>
    %64 = arith.subf %60, %63 : vector<2x8x8xf32>
    %65 = math.exp %64 : vector<2x8x8xf32>
    %cst_25 = arith.constant dense<0.000000e+00> : vector<2x8xf32>
    %66 = vector.multi_reduction <add>, %65, %cst_25 [2] : vector<2x8x8xf32> to vector<2x8xf32>
    %67 = vector.shape_cast %66 : vector<2x8xf32> to vector<2x8x1xf32>
    %68 = vector.broadcast %67 : vector<2x8x1xf32> to vector<2x8x8xf32>
    %69 = arith.divf %65, %68 : vector<2x8x8xf32>
    "tpu.trace_start"() <{level = 10 : i32, message = "bqk,bkd->bqd"}> : () -> ()
    %cst_26 = arith.constant dense<0.000000e+00> : vector<2x8x8xf32>
    %70 = tpu.matmul %69, %59, %cst_26 {dimension_numbers = #tpu.dot_dimension_numbers<[2], [1], [1], [2], [0, 0, 0, 1, 1, 2], [0], [0]>} : vector<2x8x8xf32>, vector<2x8x8xf32>, vector<2x8x8xf32> -> vector<2x8x8xf32>
    "tpu.trace_stop"() : () -> ()
    %71 = vector.shape_cast %70 : vector<2x8x8xf32> to vector<16x8xf32>
    %c0_27 = arith.constant 0 : index
    %c16 = arith.constant 16 : index
    %72 = vector.load %arg9[%c0_27, %c16] : memref<16x32xf32, #tpu.memory_space<vmem>>, vector<16x8xf32>
    tpu.vector_store %arg9[%c0_27, %c16], %71 {strides = array<i32>} : memref<16x32xf32, #tpu.memory_space<vmem>>, vector<16x8xf32>,
    %73 = vector.extract_strided_slice %22 {offsets = [0, 0, 24], sizes = [2, 8, 8], strides = [1, 1, 1]} : vector<2x8x32xf32> to vector<2x8x8xf32>
    %74 = vector.extract_strided_slice %23 {offsets = [0, 0, 24], sizes = [2, 8, 8], strides = [1, 1, 1]} : vector<2x8x32xf32> to vector<2x8x8xf32>
    %75 = vector.extract_strided_slice %24 {offsets = [0, 0, 24], sizes = [2, 8, 8], strides = [1, 1, 1]} : vector<2x8x32xf32> to vector<2x8x8xf32>
    "tpu.trace_start"() <{level = 10 : i32, message = "bqd,bkd->bqk"}> : () -> ()
    %cst_28 = arith.constant dense<0.000000e+00> : vector<2x8x8xf32>
    %76 = tpu.matmul %73, %74, %cst_28 {dimension_numbers = #tpu.dot_dimension_numbers<[2], [2], [1], [1], [0, 0, 0, 1, 1, 1], [0], [0]>} : vector<2x8x8xf32>, vector<2x8x8xf32>, vector<2x8x8xf32> -> vector<2x8x8xf32>
    "tpu.trace_stop"() : () -> ()
    %cst_29 = arith.constant dense<0xFF800000> : vector<2x8xf32>
    %77 = vector.multi_reduction <maximumf>, %76, %cst_29 [2] : vector<2x8x8xf32> to vector<2x8xf32>
    %78 = vector.shape_cast %77 : vector<2x8xf32> to vector<2x8x1xf32>
    %79 = vector.broadcast %78 : vector<2x8x1xf32> to vector<2x8x8xf32>
    %80 = arith.subf %76, %79 : vector<2x8x8xf32>
    %81 = math.exp %80 : vector<2x8x8xf32>
    %cst_30 = arith.constant dense<0.000000e+00> : vector<2x8xf32>
    %82 = vector.multi_reduction <add>, %81, %cst_30 [2] : vector<2x8x8xf32> to vector<2x8xf32>
    %83 = vector.shape_cast %82 : vector<2x8xf32> to vector<2x8x1xf32>
    %84 = vector.broadcast %83 : vector<2x8x1xf32> to vector<2x8x8xf32>
    %85 = arith.divf %81, %84 : vector<2x8x8xf32>
    "tpu.trace_start"() <{level = 10 : i32, message = "bqk,bkd->bqd"}> : () -> ()
    %cst_31 = arith.constant dense<0.000000e+00> : vector<2x8x8xf32>
    %86 = tpu.matmul %85, %75, %cst_31 {dimension_numbers = #tpu.dot_dimension_numbers<[2], [1], [1], [2], [0, 0, 0, 1, 1, 2], [0], [0]>} : vector<2x8x8xf32>, vector<2x8x8xf32>, vector<2x8x8xf32> -> vector<2x8x8xf32>
    "tpu.trace_stop"() : () -> ()
    %87 = vector.shape_cast %86 : vector<2x8x8xf32> to vector<16x8xf32>
    %c0_32 = arith.constant 0 : index
    %c24 = arith.constant 24 : index
    %88 = vector.load %arg9[%c0_32, %c24] : memref<16x32xf32, #tpu.memory_space<vmem>>, vector<16x8xf32>
    tpu.vector_store %arg9[%c0_32, %c24], %87 {strides = array<i32>} : memref<16x32xf32, #tpu.memory_space<vmem>>, vector<16x8xf32>,
    %c0_33 = arith.constant 0 : index
    %c0_34 = arith.constant 0 : index
    %89 = vector.load %arg9[%c0_33, %c0_34] : memref<16x32xf32, #tpu.memory_space<vmem>>, vector<16x32xf32>
    %c0_35 = arith.constant 0 : index
    %c0_36 = arith.constant 0 : index
    %90 = vector.load %arg6[%c0_35, %c0_36] : memref<32x32xf32, #tpu.memory_space<vmem>>, vector<32x32xf32>
    %cst_37 = arith.constant dense<0.000000e+00> : vector<16x32xf32>
    %91 = tpu.matmul %89, %90, %cst_37 {dimension_numbers = #tpu.dot_dimension_numbers<[1], [0], [0], [1], [0, 0, 1, 1], [], []>} : vector<16x32xf32>, vector<32x32xf32>, vector<16x32xf32> -> vector<16x32xf32>
    %c0_38 = arith.constant 0 : index
    %c0_39 = arith.constant 0 : index
    %92 = vector.load %arg7[%c0_38, %c0_39] : memref<1x32xf32, #tpu.memory_space<vmem>>, vector<1x32xf32>
    %93 = vector.broadcast %92 : vector<1x32xf32> to vector<16x32xf32>
    %94 = arith.addf %91, %93 : vector<16x32xf32>
    %c0_40 = arith.constant 0 : index
    %c0_41 = arith.constant 0 : index
    %95 = vector.load %arg8[%c0_40, %c0_41] : memref<16x32xf32, #tpu.memory_space<vmem>>, vector<16x32xf32>
    tpu.vector_store %arg8[%c0_40, %c0_41], %94 {strides = array<i32>} : memref<16x32xf32, #tpu.memory_space<vmem>>, vector<16x32xf32>,
    return
  }
  func.func @transform_0(%arg0: i32) -> (i32, i32) {
    %c0_i32 = arith.constant 0 : i32
    %c0_i32_0 = arith.constant 0 : i32
    %c0_i32_1 = arith.constant 0 : i32
    return %c0_i32, %c0_i32_0 : i32, i32
  }
  func.func @transform_1(%arg0: i32) -> (i32, i32) {
    %c0_i32 = arith.constant 0 : i32
    %c0_i32_0 = arith.constant 0 : i32
    %c0_i32_1 = arith.constant 0 : i32
    return %c0_i32, %c0_i32_0 : i32, i32
  }
  func.func @transform_2(%arg0: i32) -> (i32, i32) {
    %c0_i32 = arith.constant 0 : i32
    %c0_i32_0 = arith.constant 0 : i32
    %c0_i32_1 = arith.constant 0 : i32
    return %c0_i32, %c0_i32_0 : i32, i32
  }
  func.func @transform_3(%arg0: i32) -> (i32, i32) {
    %c0_i32 = arith.constant 0 : i32
    %c0_i32_0 = arith.constant 0 : i32
    %c0_i32_1 = arith.constant 0 : i32
    return %c0_i32, %c0_i32_0 : i32, i32
  }
  func.func @transform_4(%arg0: i32) -> (i32, i32) {
    %c0_i32 = arith.constant 0 : i32
    %c0_i32_0 = arith.constant 0 : i32
    %c0_i32_1 = arith.constant 0 : i32
    return %c0_i32, %c0_i32_0 : i32, i32
  }
  func.func @transform_5(%arg0: i32) -> (i32, i32) {
    %c0_i32 = arith.constant 0 : i32
    %c0_i32_0 = arith.constant 0 : i32
    %c0_i32_1 = arith.constant 0 : i32
    return %c0_i32, %c0_i32_0 : i32, i32
  }
  func.func @transform_6(%arg0: i32) -> (i32, i32) {
    %c0_i32 = arith.constant 0 : i32
    %c0_i32_0 = arith.constant 0 : i32
    %c0_i32_1 = arith.constant 0 : i32
    return %c0_i32, %c0_i32_0 : i32, i32
  }
  func.func @transform_7(%arg0: i32) -> (i32, i32) {
    %c0_i32 = arith.constant 0 : i32
    %c0_i32_0 = arith.constant 0 : i32
    %c0_i32_1 = arith.constant 0 : i32
    return %c0_i32, %c0_i32_0 : i32, i32
  }
}

</mosaic_0001>

<llo_original>
// kernel: tpu_custom_call.1
$region0: #{tpu_custom_call.1}
  #allocation0 [shape = 'u32[]', space=smem, size = 0x4, offset = 0x4, fixed_abs, tag = 'smem constant byte address 0x4 - core index']
  #allocation1 [shape = 'u32[144,128]{1,0:T(1,128)}', space=vmem, size = 0x12000, scoped, tag = 'internal scratch']
  #allocation2 [shape = 'f32[16,32]{1,0:T(8,128)}', space=vmem, size = 0x2000, scoped, tag = 'scratch operand']
  %s0 = inlined_call_operand.hbm [shape: f32[16,32], index: 0, kind: input, shape index: {}]
  %s1 = inlined_call_operand.hbm [shape: f32[16,32], index: 1, kind: input, shape index: {}]
  %s2 = inlined_call_operand.hbm [shape: f32[16,32], index: 2, kind: input, shape index: {}]
  %s3 = inlined_call_operand.hbm [shape: f32[32,96], index: 3, kind: input, shape index: {}]
  %s4 = inlined_call_operand.vmem [shape: f32[1,96], index: 4, kind: input, shape index: {}]
  %s5 = inlined_call_operand.hbm [shape: f32[32,32], index: 5, kind: input, shape index: {}]
  %s6 = inlined_call_operand.vmem [shape: f32[1,32], index: 6, kind: input, shape index: {}]
  %s7 = inlined_call_operand.hbm [shape: f32[16,32], index: 7, kind: output, shape index: {}]
  %s8 = sld [smem:[#allocation0]]
  $region58: #{tpu_custom_call.1} parent=0
    _
  %s10 = ssub.s32 1, %s8
  %s11 = scalar_select 0, %s10, %s8
  $region1: #{tpu_custom_call.1} parent=0
    #allocation3 [shape = 'u8[8192]{0}', space=vmem, size = 0x2000, scoped, tag = 'input window, operand 0, single buffered']
    #allocation4 [shape = 's32[1]{0}', space=sflag, size = 0x4, scoped, tag = 'scoped memory for tpu_custom_call.1']
    #allocation5 [shape = 's32[1]{0}', space=sflag, size = 0x4, scoped, tag = 'scoped memory for tpu_custom_call.1']
    #allocation6 [shape = 'u8[8192]{0}', space=vmem, size = 0x2000, scoped, tag = 'input window, operand 1, single buffered']
    #allocation7 [shape = 's32[1]{0}', space=sflag, size = 0x4, scoped, tag = 'scoped memory for tpu_custom_call.1']
    #allocation8 [shape = 'u8[8192]{0}', space=vmem, size = 0x2000, scoped, tag = 'input window, operand 2, single buffered']
    #allocation9 [shape = 'u8[16384]{0}', space=vmem, size = 0x4000, scoped, tag = 'input window, operand 3, single buffered']
    #allocation10 [shape = 's32[1]{0}', space=sflag, size = 0x4, scoped, tag = 'scoped memory for tpu_custom_call.1']
    #allocation11 [shape = 'u8[16384]{0}', space=vmem, size = 0x4000, scoped, tag = 'input window, operand 5, single buffered']
    #allocation12 [shape = 'u8[8192]{0}', space=vmem, size = 0x2000, scoped, tag = 'output window, operand 0, single buffered']
    %12 = vsyncpa [#allocation4], 0
    %13 = vsyncpa [#allocation7], 0
    %14 = vsyncpa [#allocation10], 0
    %15 = vsyncpa [#allocation5], 0
    // Predicated region
    $region2: #{tpu_custom_call.1} parent=1 // pred_check
      _
    $region3: #{tpu_custom_call.1} parent=1 // pred_check_branch
      %17 = sbr.rel (0) target = $region5
    $region4: #{tpu_custom_call.1} parent=1 // pred_region
      %s19 = ssub.s32 256, 256
      %20 = vsyncadd [#allocation4], %s19
      %s21 = sshll.u32 [#allocation3], 4
      %s22 = int_to_ptr.vmem [resolvable:$true] %s21
      %27 = dma.hbm_to_vmem [thread:$0]  %s0, 256, %s22, [#allocation4], 128, 128, 8
    $region5: #{tpu_custom_call.1} parent=1 // pred_fallthru
      _
    // Predicated region
    $region6: #{tpu_custom_call.1} parent=1 // pred_check
      _
    $region7: #{tpu_custom_call.1} parent=1 // pred_check_branch
      %29 = sbr.rel (0) target = $region9
    $region8: #{tpu_custom_call.1} parent=1 // pred_region
      %s31 = ssub.s32 256, 256
      %32 = vsyncadd [#allocation7], %s31
      %s33 = sshll.u32 [#allocation6], 4
      %s34 = int_to_ptr.vmem [resolvable:$true] %s33
      %39 = dma.hbm_to_vmem [thread:$0]  %s1, 256, %s34, [#allocation7], 128, 128, 8
    $region9: #{tpu_custom_call.1} parent=1 // pred_fallthru
      _
    // Predicated region
    $region10: #{tpu_custom_call.1} parent=1 // pred_check
      _
    $region11: #{tpu_custom_call.1} parent=1 // pred_check_branch
      %41 = sbr.rel (0) target = $region13
    $region12: #{tpu_custom_call.1} parent=1 // pred_region
      %s43 = ssub.s32 256, 256
      %44 = vsyncadd [#allocation7], %s43
      %s45 = sshll.u32 [#allocation8], 4
      %s46 = int_to_ptr.vmem [resolvable:$true] %s45
      %51 = dma.hbm_to_vmem [thread:$0]  %s2, 256, %s46, [#allocation7], 128, 128, 8
    $region13: #{tpu_custom_call.1} parent=1 // pred_fallthru
      _
    // Predicated region
    $region14: #{tpu_custom_call.1} parent=1 // pred_check
      _
    $region15: #{tpu_custom_call.1} parent=1 // pred_check_branch
      %53 = sbr.rel (0) target = $region17
    $region16: #{tpu_custom_call.1} parent=1 // pred_region
      %s55 = ssub.s32 512, 512
      %56 = vsyncadd [#allocation10], %s55
      %s57 = sshll.u32 [#allocation9], 4
      %s58 = int_to_ptr.vmem [resolvable:$true] %s57
      %63 = dma.hbm_to_vmem [thread:$0]  %s3, 512, %s58, [#allocation10], 128, 128, 8
    $region17: #{tpu_custom_call.1} parent=1 // pred_fallthru
      _
    // Predicated region
    $region18: #{tpu_custom_call.1} parent=1 // pred_check
      _
    $region19: #{tpu_custom_call.1} parent=1 // pred_check_branch
      %65 = sbr.rel (0) target = $region21
    $region20: #{tpu_custom_call.1} parent=1 // pred_region
      _
    $region21: #{tpu_custom_call.1} parent=1 // pred_fallthru
      _
    // Predicated region
    $region22: #{tpu_custom_call.1} parent=1 // pred_check
      _
    $region23: #{tpu_custom_call.1} parent=1 // pred_check_branch
      %67 = sbr.rel (0) target = $region25
    $region24: #{tpu_custom_call.1} parent=1 // pred_region
      %s69 = ssub.s32 512, 512
      %70 = vsyncadd [#allocation10], %s69
      %s71 = sshll.u32 [#allocation11], 4
      %s72 = int_to_ptr.vmem [resolvable:$true] %s71
      %77 = dma.hbm_to_vmem [thread:$0]  %s5, 512, %s72, [#allocation10], 128, 128, 8
    $region25: #{tpu_custom_call.1} parent=1 // pred_fallthru
      _
    // Predicated region
    $region26: #{tpu_custom_call.1} parent=1 // pred_check
      _
    $region27: #{tpu_custom_call.1} parent=1 // pred_check_branch
      %79 = sbr.rel (0) target = $region29
    $region28: #{tpu_custom_call.1} parent=1 // pred_region
      _
    $region29: #{tpu_custom_call.1} parent=1 // pred_fallthru
      _
    // Predicated region
    $region30: #{tpu_custom_call.1} parent=1 // pred_check
      _
    $region31: #{tpu_custom_call.1} parent=1 // pred_check_branch
      %81 = sbr.rel (0) target = $region33
    $region32: #{tpu_custom_call.1} parent=1 // pred_region
      %82 = dma.done [#allocation4], 256
    $region33: #{tpu_custom_call.1} parent=1 // pred_fallthru
      _
    // Predicated region
    $region34: #{tpu_custom_call.1} parent=1 // pred_check
      _
    $region35: #{tpu_custom_call.1} parent=1 // pred_check_branch
      %84 = sbr.rel (0) target = $region37
    $region36: #{tpu_custom_call.1} parent=1 // pred_region
      %85 = dma.done [#allocation7], 256
    $region37: #{tpu_custom_call.1} parent=1 // pred_fallthru
      _
    // Predicated region
    $region38: #{tpu_custom_call.1} parent=1 // pred_check
      _
    $region39: #{tpu_custom_call.1} parent=1 // pred_check_branch
      %87 = sbr.rel (0) target = $region41
    $region40: #{tpu_custom_call.1} parent=1 // pred_region
      %88 = dma.done [#allocation7], 256
    $region41: #{tpu_custom_call.1} parent=1 // pred_fallthru
      _
    // Predicated region
    $region42: #{tpu_custom_call.1} parent=1 // pred_check
      _
    $region43: #{tpu_custom_call.1} parent=1 // pred_check_branch
      %90 = sbr.rel (0) target = $region45
    $region44: #{tpu_custom_call.1} parent=1 // pred_region
      %91 = dma.done [#allocation10], 512
    $region45: #{tpu_custom_call.1} parent=1 // pred_fallthru
      _
    // Predicated region
    $region46: #{tpu_custom_call.1} parent=1 // pred_check
      _
    $region47: #{tpu_custom_call.1} parent=1 // pred_check_branch
      %93 = sbr.rel (0) target = $region49
    $region48: #{tpu_custom_call.1} parent=1 // pred_region
      %94 = dma.done [#allocation10], 512
    $region49: #{tpu_custom_call.1} parent=1 // pred_fallthru
      _
    %v95 = vld [vmem:[#allocation9] sm:$0xff]
    %v96 = vld [vmem:[#allocation9 + $0x8] sm:$0xff]
    %v97 = vld [vmem:[#allocation9 + $0x10] sm:$0xff]
    %v98 = vld [vmem:[#allocation9 + $0x18] sm:$0xff]
    %v99 = vld [vmem:[%s4] sm:$0x1]
    %v100 = vld [vmem:[#allocation3] sm:$0xff]
    %v101 = vld [vmem:[#allocation3 + $0x8] sm:$0xff]
    %v103 = vlaneseq
    %v104 = vshrl.u32 %v103, 7
    %v105 = vsub.s32 0, %v104
    %v106 = vrot.slane %v99, %v105
    %vm108 = vcmask 261120
    %v110 = vsel %vm108, %v100, 0
    %v113 = vsel %vm108, %v101, 0
    %115 = vmatprep.subr.mxu0 0.0
    %116 = vmatpush1.msra.mxu0 %v95
    %117 = vmatprep.subr.mxu0 0.0
    %118 = vmatpush1.msra.mxu0 %v96
    %119 = vmatprep.subr.mxu0 0.0
    %120 = vmatpush1.msra.mxu0 %v97
    %121 = vmatprep.subr.mxu0 0.0
    %122 = vmatpush1.msra.mxu0 %v98
    %123 = vmatprep.subr.mxu0 0.0
    %124 = vmatpush1.msra.mxu0 0.0
    %125 = vmatprep.subr.mxu0 0.0
    %126 = vmatpush1.msra.mxu0 0.0
    %127 = vmatprep.subr.mxu0 0.0
    %128 = vmatpush1.msra.mxu0 0.0
    %129 = vmatprep.subr.mxu0 0.0
    %130 = vmatpush1.msra.mxu0 0.0
    %131 = vmatprep.subr.mxu0 0.0
    %132 = vmatpush1.msra.mxu0 0.0
    %133 = vmatprep.subr.mxu0 0.0
    %134 = vmatpush1.msra.mxu0 0.0
    %135 = vmatprep.subr.mxu0 0.0
    %136 = vmatpush1.msra.mxu0 0.0
    %137 = vmatprep.subr.mxu0 0.0
    %138 = vmatpush1.msra.mxu0 0.0
    %139 = vmatprep.subr.mxu0 0.0
    %140 = vmatpush1.msra.mxu0 0.0
    %141 = vmatprep.subr.mxu0 0.0
    %142 = vmatpush1.msra.mxu0 0.0
    %143 = vmatprep.subr.mxu0 0.0
    %144 = vmatpush1.msra.mxu0 0.0
    %145 = vmatprep.subr.mxu0 0.0
    %146 = vmatpush1.msra.mxu0 0.0
    %147 = vmatprep.subr.mxu0 0.0
    %148 = vmatpush1.msra.mxu0 0.0
    %149 = vmatprep.subr.mxu0 0.0
    %150 = vmatpush1.msra.mxu0 0.0
    %151 = vmatprep.subr.mxu0 0.0
    %152 = vmatpush1.msra.mxu0 0.0
    %153 = vmatprep.subr.mxu0 0.0
    %154 = vmatpush1.msra.mxu0 0.0
    %155 = vmatprep.subr.mxu0 0.0
    %156 = vmatpush1.msra.mxu0 0.0
    %157 = vmatprep.subr.mxu0 0.0
    %158 = vmatpush1.msra.mxu0 0.0
    %159 = vmatprep.subr.mxu0 0.0
    %160 = vmatpush1.msra.mxu0 0.0
    %161 = vmatprep.subr.mxu0 0.0
    %162 = vmatpush1.msra.mxu0 0.0
    %163 = vmatprep.subr.mxu0 0.0
    %164 = vmatpush1.msra.mxu0 0.0
    %165 = vmatprep.subr.mxu0 0.0
    %166 = vmatpush1.msra.mxu0 0.0
    %167 = vmatprep.subr.mxu0 0.0
    %168 = vmatpush1.msra.mxu0 0.0
    %169 = vmatprep.subr.mxu0 0.0
    %170 = vmatpush1.msra.mxu0 0.0
    %171 = vmatprep.subr.mxu0 0.0
    %172 = vmatpush1.msra.mxu0 0.0
    %173 = vmatprep.subr.mxu0 0.0
    %174 = vmatpush1.msra.mxu0 0.0
    %175 = vmatprep.subr.mxu0 0.0
    %176 = vmatpush1.msra.mxu0 0.0
    %177 = vmatprep.subr.mxu0 0.0
    %178 = vmatpush1.msra.mxu0 0.0
    %179 = vmatprep.mubr.f32.mxu0 0.0
    %180 = vmatmul.mubr.f32.gmra.mrb[0].mxu0 %v110
    %v181 = vpop.f32.mrb[0].mxu0
    %v182 = vadd.f32 %v106, %v181
    %v183 = vpop.f32.mrb[0].mxu0
    %184 = vmatprep.mubr.f32.mxu0 0.0
    %185 = vmatmul.mubr.f32.gmra.mrb[0].mxu0 %v113
    %v186 = vpop.f32.mrb[0].mxu0
    %v187 = vadd.f32 %v106, %v186
    %v188 = vpop.f32.mrb[0].mxu0
    %189 = vdwg.mxu0
    %v190 = vmul.f32 %v182, 0.35355338
    %v191 = vmul.f32 %v187, 0.35355338
    %v192 = vld [vmem:[#allocation6] sm:$0xff]
    %v193 = vld [vmem:[#allocation6 + $0x8] sm:$0xff]
    %198 = vrot.lane.b32.xlu0 %v95, 96
    %v199 = vpop.permute.xlu0 %198
    %200 = vrot.lane.b32.xlu0 %v96, 96
    %v201 = vpop.permute.xlu0 %200
    %202 = vrot.lane.b32.xlu0 %v97, 96
    %v203 = vpop.permute.xlu0 %202
    %204 = vrot.lane.b32.xlu0 %v98, 96
    %v205 = vpop.permute.xlu0 %204
    %210 = vrot.lane.b32.xlu0 %v106, 96
    %v211 = vpop.permute.xlu0 %210
    %v214 = vsel %vm108, %v192, 0
    %v217 = vsel %vm108, %v193, 0
    %219 = vmatprep.subr.mxu0 0.0
    %220 = vmatpush1.msra.mxu0 %v199
    %221 = vmatprep.subr.mxu0 0.0
    %222 = vmatpush1.msra.mxu0 %v201
    %223 = vmatprep.subr.mxu0 0.0
    %224 = vmatpush1.msra.mxu0 %v203
    %225 = vmatprep.subr.mxu0 0.0
    %226 = vmatpush1.msra.mxu0 %v205
    %227 = vmatprep.subr.mxu0 0.0
    %228 = vmatpush1.msra.mxu0 0.0
    %229 = vmatprep.subr.mxu0 0.0
    %230 = vmatpush1.msra.mxu0 0.0
    %231 = vmatprep.subr.mxu0 0.0
    %232 = vmatpush1.msra.mxu0 0.0
    %233 = vmatprep.subr.mxu0 0.0
    %234 = vmatpush1.msra.mxu0 0.0
    %235 = vmatprep.subr.mxu0 0.0
    %236 = vmatpush1.msra.mxu0 0.0
    %237 = vmatprep.subr.mxu0 0.0
    %238 = vmatpush1.msra.mxu0 0.0
    %239 = vmatprep.subr.mxu0 0.0
    %240 = vmatpush1.msra.mxu0 0.0
    %241 = vmatprep.subr.mxu0 0.0
    %242 = vmatpush1.msra.mxu0 0.0
    %243 = vmatprep.subr.mxu0 0.0
    %244 = vmatpush1.msra.mxu0 0.0
    %245 = vmatprep.subr.mxu0 0.0
    %246 = vmatpush1.msra.mxu0 0.0
    %247 = vmatprep.subr.mxu0 0.0
    %248 = vmatpush1.msra.mxu0 0.0
    %249 = vmatprep.subr.mxu0 0.0
    %250 = vmatpush1.msra.mxu0 0.0
    %251 = vmatprep.subr.mxu0 0.0
    %252 = vmatpush1.msra.mxu0 0.0
    %253 = vmatprep.subr.mxu0 0.0
    %254 = vmatpush1.msra.mxu0 0.0
    %255 = vmatprep.subr.mxu0 0.0
    %256 = vmatpush1.msra.mxu0 0.0
    %257 = vmatprep.subr.mxu0 0.0
    %258 = vmatpush1.msra.mxu0 0.0
    %259 = vmatprep.subr.mxu0 0.0
    %260 = vmatpush1.msra.mxu0 0.0
    %261 = vmatprep.subr.mxu0 0.0
    %262 = vmatpush1.msra.mxu0 0.0
    %263 = vmatprep.subr.mxu0 0.0
    %264 = vmatpush1.msra.mxu0 0.0
    %265 = vmatprep.subr.mxu0 0.0
    %266 = vmatpush1.msra.mxu0 0.0
    %267 = vmatprep.subr.mxu0 0.0
    %268 = vmatpush1.msra.mxu0 0.0
    %269 = vmatprep.subr.mxu0 0.0
    %270 = vmatpush1.msra.mxu0 0.0
    %271 = vmatprep.subr.mxu0 0.0
    %272 = vmatpush1.msra.mxu0 0.0
    %273 = vmatprep.subr.mxu0 0.0
    %274 = vmatpush1.msra.mxu0 0.0
    %275 = vmatprep.subr.mxu0 0.0
    %276 = vmatpush1.msra.mxu0 0.0
    %277 = vmatprep.subr.mxu0 0.0
    %278 = vmatpush1.msra.mxu0 0.0
    %279 = vmatprep.subr.mxu0 0.0
    %280 = vmatpush1.msra.mxu0 0.0
    %281 = vmatprep.subr.mxu0 0.0
    %282 = vmatpush1.msra.mxu0 0.0
    %283 = vmatprep.mubr.f32.mxu0 0.0
    %284 = vmatmul.mubr.f32.gmra.mrb[0].mxu0 %v214
    %v285 = vpop.f32.mrb[0].mxu0
    %v286 = vadd.f32 %v211, %v285
    %v287 = vpop.f32.mrb[0].mxu0
    %288 = vmatprep.mubr.f32.mxu0 0.0
    %289 = vmatmul.mubr.f32.gmra.mrb[0].mxu0 %v217
    %v290 = vpop.f32.mrb[0].mxu0
    %v291 = vadd.f32 %v211, %v290
    %v292 = vpop.f32.mrb[0].mxu0
    %293 = vdwg.mxu0
    %v294 = vld [vmem:[#allocation8] sm:$0xff]
    %v295 = vld [vmem:[#allocation8 + $0x8] sm:$0xff]
    %296 = vrot.lane.b32.xlu0 %v95, 64
    %v297 = vpop.permute.xlu0 %296
    %298 = vrot.lane.b32.xlu0 %v96, 64
    %v299 = vpop.permute.xlu0 %298
    %300 = vrot.lane.b32.xlu0 %v97, 64
    %v301 = vpop.permute.xlu0 %300
    %302 = vrot.lane.b32.xlu0 %v98, 64
    %v303 = vpop.permute.xlu0 %302
    %308 = vrot.lane.b32.xlu0 %v106, 64
    %v309 = vpop.permute.xlu0 %308
    %v312 = vsel %vm108, %v294, 0
    %v315 = vsel %vm108, %v295, 0
    %317 = vmatprep.subr.mxu0 0.0
    %318 = vmatpush1.msra.mxu0 %v297
    %319 = vmatprep.subr.mxu0 0.0
    %320 = vmatpush1.msra.mxu0 %v299
    %321 = vmatprep.subr.mxu0 0.0
    %322 = vmatpush1.msra.mxu0 %v301
    %323 = vmatprep.subr.mxu0 0.0
    %324 = vmatpush1.msra.mxu0 %v303
    %325 = vmatprep.subr.mxu0 0.0
    %326 = vmatpush1.msra.mxu0 0.0
    %327 = vmatprep.subr.mxu0 0.0
    %328 = vmatpush1.msra.mxu0 0.0
    %329 = vmatprep.subr.mxu0 0.0
    %330 = vmatpush1.msra.mxu0 0.0
    %331 = vmatprep.subr.mxu0 0.0
    %332 = vmatpush1.msra.mxu0 0.0
    %333 = vmatprep.subr.mxu0 0.0
    %334 = vmatpush1.msra.mxu0 0.0
    %335 = vmatprep.subr.mxu0 0.0
    %336 = vmatpush1.msra.mxu0 0.0
    %337 = vmatprep.subr.mxu0 0.0
    %338 = vmatpush1.msra.mxu0 0.0
    %339 = vmatprep.subr.mxu0 0.0
    %340 = vmatpush1.msra.mxu0 0.0
    %341 = vmatprep.subr.mxu0 0.0
    %342 = vmatpush1.msra.mxu0 0.0
    %343 = vmatprep.subr.mxu0 0.0
    %344 = vmatpush1.msra.mxu0 0.0
    %345 = vmatprep.subr.mxu0 0.0
    %346 = vmatpush1.msra.mxu0 0.0
    %347 = vmatprep.subr.mxu0 0.0
    %348 = vmatpush1.msra.mxu0 0.0
    %349 = vmatprep.subr.mxu0 0.0
    %350 = vmatpush1.msra.mxu0 0.0
    %351 = vmatprep.subr.mxu0 0.0
    %352 = vmatpush1.msra.mxu0 0.0
    %353 = vmatprep.subr.mxu0 0.0
    %354 = vmatpush1.msra.mxu0 0.0
    %355 = vmatprep.subr.mxu0 0.0
    %356 = vmatpush1.msra.mxu0 0.0
    %357 = vmatprep.subr.mxu0 0.0
    %358 = vmatpush1.msra.mxu0 0.0
    %359 = vmatprep.subr.mxu0 0.0
    %360 = vmatpush1.msra.mxu0 0.0
    %361 = vmatprep.subr.mxu0 0.0
    %362 = vmatpush1.msra.mxu0 0.0
    %363 = vmatprep.subr.mxu0 0.0
    %364 = vmatpush1.msra.mxu0 0.0
    %365 = vmatprep.subr.mxu0 0.0
    %366 = vmatpush1.msra.mxu0 0.0
    %367 = vmatprep.subr.mxu0 0.0
    %368 = vmatpush1.msra.mxu0 0.0
    %369 = vmatprep.subr.mxu0 0.0
    %370 = vmatpush1.msra.mxu0 0.0
    %371 = vmatprep.subr.mxu0 0.0
    %372 = vmatpush1.msra.mxu0 0.0
    %373 = vmatprep.subr.mxu0 0.0
    %374 = vmatpush1.msra.mxu0 0.0
    %375 = vmatprep.subr.mxu0 0.0
    %376 = vmatpush1.msra.mxu0 0.0
    %377 = vmatprep.subr.mxu0 0.0
    %378 = vmatpush1.msra.mxu0 0.0
    %379 = vmatprep.subr.mxu0 0.0
    %380 = vmatpush1.msra.mxu0 0.0
    %381 = vmatprep.mubr.f32.mxu0 0.0
    %382 = vmatmul.mubr.f32.gmra.mrb[0].mxu0 %v312
    %v383 = vpop.f32.mrb[0].mxu0
    %v384 = vadd.f32 %v309, %v383
    %v385 = vpop.f32.mrb[0].mxu0
    %386 = vmatprep.mubr.f32.mxu0 0.0
    %387 = vmatmul.mubr.f32.gmra.mrb[0].mxu0 %v315
    %v388 = vpop.f32.mrb[0].mxu0
    %v389 = vadd.f32 %v309, %v388
    %v390 = vpop.f32.mrb[0].mxu0
    %391 = vdwg.mxu0
    %vm392 = vcmask 64512
    %v394 = vsel %vm392, %v190, 0
    %v397 = vsel %vm392, %v286, 0
    %399 = vmatprep.subr.mxu0 0.0
    %400 = vmatpush1.xpose.msra.mxu0 %v397
    %401 = vmatprep.subr.mxu0 0.0
    %402 = vmatpush1.xpose.msra.mxu0 0.0
    %403 = vmatprep.subr.mxu0 0.0
    %404 = vmatpush1.xpose.msra.mxu0 0.0
    %405 = vmatprep.subr.mxu0 0.0
    %406 = vmatpush1.xpose.msra.mxu0 0.0
    %407 = vmatprep.subr.mxu0 0.0
    %408 = vmatpush1.xpose.msra.mxu0 0.0
    %409 = vmatprep.subr.mxu0 0.0
    %410 = vmatpush1.xpose.msra.mxu0 0.0
    %411 = vmatprep.subr.mxu0 0.0
    %412 = vmatpush1.xpose.msra.mxu0 0.0
    %413 = vmatprep.subr.mxu0 0.0
    %414 = vmatpush1.xpose.msra.mxu0 0.0
    %415 = vmatprep.subr.mxu0 0.0
    %416 = vmatpush1.xpose.msra.mxu0 0.0
    %417 = vmatprep.subr.mxu0 0.0
    %418 = vmatpush1.xpose.msra.mxu0 0.0
    %419 = vmatprep.subr.mxu0 0.0
    %420 = vmatpush1.xpose.msra.mxu0 0.0
    %421 = vmatprep.subr.mxu0 0.0
    %422 = vmatpush1.xpose.msra.mxu0 0.0
    %423 = vmatprep.subr.mxu0 0.0
    %424 = vmatpush1.xpose.msra.mxu0 0.0
    %425 = vmatprep.subr.mxu0 0.0
    %426 = vmatpush1.xpose.msra.mxu0 0.0
    %427 = vmatprep.subr.mxu0 0.0
    %428 = vmatpush1.xpose.msra.mxu0 0.0
    %429 = vmatprep.subr.mxu0 0.0
    %430 = vmatpush1.xpose.msra.mxu0 0.0
    %431 = vmatprep.subr.mxu0 0.0
    %432 = vmatpush1.xpose.msra.mxu0 0.0
    %433 = vmatprep.subr.mxu0 0.0
    %434 = vmatpush1.xpose.msra.mxu0 0.0
    %435 = vmatprep.subr.mxu0 0.0
    %436 = vmatpush1.xpose.msra.mxu0 0.0
    %437 = vmatprep.subr.mxu0 0.0
    %438 = vmatpush1.xpose.msra.mxu0 0.0
    %439 = vmatprep.subr.mxu0 0.0
    %440 = vmatpush1.xpose.msra.mxu0 0.0
    %441 = vmatprep.subr.mxu0 0.0
    %442 = vmatpush1.xpose.msra.mxu0 0.0
    %443 = vmatprep.subr.mxu0 0.0
    %444 = vmatpush1.xpose.msra.mxu0 0.0
    %445 = vmatprep.subr.mxu0 0.0
    %446 = vmatpush1.xpose.msra.mxu0 0.0
    %447 = vmatprep.subr.mxu0 0.0
    %448 = vmatpush1.xpose.msra.mxu0 0.0
    %449 = vmatprep.subr.mxu0 0.0
    %450 = vmatpush1.xpose.msra.mxu0 0.0
    %451 = vmatprep.subr.mxu0 0.0
    %452 = vmatpush1.xpose.msra.mxu0 0.0
    %453 = vmatprep.subr.mxu0 0.0
    %454 = vmatpush1.xpose.msra.mxu0 0.0
    %455 = vmatprep.subr.mxu0 0.0
    %456 = vmatpush1.xpose.msra.mxu0 0.0
    %457 = vmatprep.subr.mxu0 0.0
    %458 = vmatpush1.xpose.msra.mxu0 0.0
    %459 = vmatprep.subr.mxu0 0.0
    %460 = vmatpush1.xpose.msra.mxu0 0.0
    %461 = vmatprep.subr.mxu0 0.0
    %462 = vmatpush1.xpose.msra.mxu0 0.0
    %463 = vmatprep.mubr.f32.mxu0 0.0
    %464 = vmatmul.mubr.f32.gmra.mrb[0].mxu0 %v394
    %v465 = vpop.f32.mrb[0].mxu0
    %v466 = vadd.f32 0.0, %v465
    %v467 = vpop.f32.mrb[0].mxu0
    %468 = vdwg.mxu0
    %v470 = vsel %vm392, %v191, 0
    %v473 = vsel %vm392, %v291, 0
    %475 = vmatprep.subr.mxu0 0.0
    %476 = vmatpush1.xpose.msra.mxu0 %v473
    %477 = vmatprep.subr.mxu0 0.0
    %478 = vmatpush1.xpose.msra.mxu0 0.0
    %479 = vmatprep.subr.mxu0 0.0
    %480 = vmatpush1.xpose.msra.mxu0 0.0
    %481 = vmatprep.subr.mxu0 0.0
    %482 = vmatpush1.xpose.msra.mxu0 0.0
    %483 = vmatprep.subr.mxu0 0.0
    %484 = vmatpush1.xpose.msra.mxu0 0.0
    %485 = vmatprep.subr.mxu0 0.0
    %486 = vmatpush1.xpose.msra.mxu0 0.0
    %487 = vmatprep.subr.mxu0 0.0
    %488 = vmatpush1.xpose.msra.mxu0 0.0
    %489 = vmatprep.subr.mxu0 0.0
    %490 = vmatpush1.xpose.msra.mxu0 0.0
    %491 = vmatprep.subr.mxu0 0.0
    %492 = vmatpush1.xpose.msra.mxu0 0.0
    %493 = vmatprep.subr.mxu0 0.0
    %494 = vmatpush1.xpose.msra.mxu0 0.0
    %495 = vmatprep.subr.mxu0 0.0
    %496 = vmatpush1.xpose.msra.mxu0 0.0
    %497 = vmatprep.subr.mxu0 0.0
    %498 = vmatpush1.xpose.msra.mxu0 0.0
    %499 = vmatprep.subr.mxu0 0.0
    %500 = vmatpush1.xpose.msra.mxu0 0.0
    %501 = vmatprep.subr.mxu0 0.0
    %502 = vmatpush1.xpose.msra.mxu0 0.0
    %503 = vmatprep.subr.mxu0 0.0
    %504 = vmatpush1.xpose.msra.mxu0 0.0
    %505 = vmatprep.subr.mxu0 0.0
    %506 = vmatpush1.xpose.msra.mxu0 0.0
    %507 = vmatprep.subr.mxu0 0.0
    %508 = vmatpush1.xpose.msra.mxu0 0.0
    %509 = vmatprep.subr.mxu0 0.0
    %510 = vmatpush1.xpose.msra.mxu0 0.0
    %511 = vmatprep.subr.mxu0 0.0
    %512 = vmatpush1.xpose.msra.mxu0 0.0
    %513 = vmatprep.subr.mxu0 0.0
    %514 = vmatpush1.xpose.msra.mxu0 0.0
    %515 = vmatprep.subr.mxu0 0.0
    %516 = vmatpush1.xpose.msra.mxu0 0.0
    %517 = vmatprep.subr.mxu0 0.0
    %518 = vmatpush1.xpose.msra.mxu0 0.0
    %519 = vmatprep.subr.mxu0 0.0
    %520 = vmatpush1.xpose.msra.mxu0 0.0
    %521 = vmatprep.subr.mxu0 0.0
    %522 = vmatpush1.xpose.msra.mxu0 0.0
    %523 = vmatprep.subr.mxu0 0.0
    %524 = vmatpush1.xpose.msra.mxu0 0.0
    %525 = vmatprep.subr.mxu0 0.0
    %526 = vmatpush1.xpose.msra.mxu0 0.0
    %527 = vmatprep.subr.mxu0 0.0
    %528 = vmatpush1.xpose.msra.mxu0 0.0
    %529 = vmatprep.subr.mxu0 0.0
    %530 = vmatpush1.xpose.msra.mxu0 0.0
    %531 = vmatprep.subr.mxu0 0.0
    %532 = vmatpush1.xpose.msra.mxu0 0.0
    %533 = vmatprep.subr.mxu0 0.0
    %534 = vmatpush1.xpose.msra.mxu0 0.0
    %535 = vmatprep.subr.mxu0 0.0
    %536 = vmatpush1.xpose.msra.mxu0 0.0
    %537 = vmatprep.subr.mxu0 0.0
    %538 = vmatpush1.xpose.msra.mxu0 0.0
    %539 = vmatprep.mubr.f32.mxu0 0.0
    %540 = vmatmul.mubr.f32.gmra.mrb[0].mxu0 %v470
    %v541 = vpop.f32.mrb[0].mxu0
    %v542 = vadd.f32 0.0, %v541
    %v543 = vpop.f32.mrb[0].mxu0
    %544 = vdwg.mxu0
    %v545 = vsel %vm392, %v466, -inf
    %546 = vmax.xlane.f32.xlu0 %v545
    %v547 = vpop.xlane.xlu0 %546
    %v548 = vsel %vm392, %v542, -inf
    %549 = vmax.xlane.f32.xlu0 %v548
    %v550 = vpop.xlane.xlu0 %549
    %v551 = vsub.f32 %v466, %v547
    %v552 = vsub.f32 %v542, %v550
    %v553 = vmul.f32 %v551, 1.442695
    %v554 = vpow.pop %v553
    %v555 = vmul.f32 %v552, 1.442695
    %v556 = vpow.pop %v555
    %v557 = vsel %vm392, %v554, 0.0
    %558 = vadd.xlane.f32.xlu0 %v557
    %v559 = vpop.xlane.xlu0 %558
    %v560 = vsel %vm392, %v556, 0.0
    %561 = vadd.xlane.f32.xlu0 %v560
    %v562 = vpop.xlane.xlu0 %561
    %v563 = vrcp.pop %v559
    %v564 = vmul.f32 %v554, %v563
    %v565 = vrcp.pop %v562
    %v566 = vmul.f32 %v556, %v565
    %v568 = vsel %vm392, %v564, 0
    %570 = vmatprep.subr.mxu0 0.0
    %571 = vmatpush1.msra.mxu0 %v384
    %572 = vmatprep.subr.mxu0 0.0
    %573 = vmatpush1.msra.mxu0 0.0
    %574 = vmatprep.subr.mxu0 0.0
    %575 = vmatpush1.msra.mxu0 0.0
    %576 = vmatprep.subr.mxu0 0.0
    %577 = vmatpush1.msra.mxu0 0.0
    %578 = vmatprep.subr.mxu0 0.0
    %579 = vmatpush1.msra.mxu0 0.0
    %580 = vmatprep.subr.mxu0 0.0
    %581 = vmatpush1.msra.mxu0 0.0
    %582 = vmatprep.subr.mxu0 0.0
    %583 = vmatpush1.msra.mxu0 0.0
    %584 = vmatprep.subr.mxu0 0.0
    %585 = vmatpush1.msra.mxu0 0.0
    %586 = vmatprep.subr.mxu0 0.0
    %587 = vmatpush1.msra.mxu0 0.0
    %588 = vmatprep.subr.mxu0 0.0
    %589 = vmatpush1.msra.mxu0 0.0
    %590 = vmatprep.subr.mxu0 0.0
    %591 = vmatpush1.msra.mxu0 0.0
    %592 = vmatprep.subr.mxu0 0.0
    %593 = vmatpush1.msra.mxu0 0.0
    %594 = vmatprep.subr.mxu0 0.0
    %595 = vmatpush1.msra.mxu0 0.0
    %596 = vmatprep.subr.mxu0 0.0
    %597 = vmatpush1.msra.mxu0 0.0
    %598 = vmatprep.subr.mxu0 0.0
    %599 = vmatpush1.msra.mxu0 0.0
    %600 = vmatprep.subr.mxu0 0.0
    %601 = vmatpush1.msra.mxu0 0.0
    %602 = vmatprep.subr.mxu0 0.0
    %603 = vmatpush1.msra.mxu0 0.0
    %604 = vmatprep.subr.mxu0 0.0
    %605 = vmatpush1.msra.mxu0 0.0
    %606 = vmatprep.subr.mxu0 0.0
    %607 = vmatpush1.msra.mxu0 0.0
    %608 = vmatprep.subr.mxu0 0.0
    %609 = vmatpush1.msra.mxu0 0.0
    %610 = vmatprep.subr.mxu0 0.0
    %611 = vmatpush1.msra.mxu0 0.0
    %612 = vmatprep.subr.mxu0 0.0
    %613 = vmatpush1.msra.mxu0 0.0
    %614 = vmatprep.subr.mxu0 0.0
    %615 = vmatpush1.msra.mxu0 0.0
    %616 = vmatprep.subr.mxu0 0.0
    %617 = vmatpush1.msra.mxu0 0.0
    %618 = vmatprep.subr.mxu0 0.0
    %619 = vmatpush1.msra.mxu0 0.0
    %620 = vmatprep.subr.mxu0 0.0
    %621 = vmatpush1.msra.mxu0 0.0
    %622 = vmatprep.subr.mxu0 0.0
    %623 = vmatpush1.msra.mxu0 0.0
    %624 = vmatprep.subr.mxu0 0.0
    %625 = vmatpush1.msra.mxu0 0.0
    %626 = vmatprep.subr.mxu0 0.0
    %627 = vmatpush1.msra.mxu0 0.0
    %628 = vmatprep.subr.mxu0 0.0
    %629 = vmatpush1.msra.mxu0 0.0
    %630 = vmatprep.subr.mxu0 0.0
    %631 = vmatpush1.msra.mxu0 0.0
    %632 = vmatprep.subr.mxu0 0.0
    %633 = vmatpush1.msra.mxu0 0.0
    %634 = vmatprep.mubr.f32.mxu0 0.0
    %635 = vmatmul.mubr.f32.gmra.mrb[0].mxu0 %v568
    %v636 = vpop.f32.mrb[0].mxu0
    %v637 = vadd.f32 0.0, %v636
    %v638 = vpop.f32.mrb[0].mxu0
    %639 = vdwg.mxu0
    %v641 = vsel %vm392, %v566, 0
    %643 = vmatprep.subr.mxu0 0.0
    %644 = vmatpush1.msra.mxu0 %v389
    %645 = vmatprep.subr.mxu0 0.0
    %646 = vmatpush1.msra.mxu0 0.0
    %647 = vmatprep.subr.mxu0 0.0
    %648 = vmatpush1.msra.mxu0 0.0
    %649 = vmatprep.subr.mxu0 0.0
    %650 = vmatpush1.msra.mxu0 0.0
    %651 = vmatprep.subr.mxu0 0.0
    %652 = vmatpush1.msra.mxu0 0.0
    %653 = vmatprep.subr.mxu0 0.0
    %654 = vmatpush1.msra.mxu0 0.0
    %655 = vmatprep.subr.mxu0 0.0
    %656 = vmatpush1.msra.mxu0 0.0
    %657 = vmatprep.subr.mxu0 0.0
    %658 = vmatpush1.msra.mxu0 0.0
    %659 = vmatprep.subr.mxu0 0.0
    %660 = vmatpush1.msra.mxu0 0.0
    %661 = vmatprep.subr.mxu0 0.0
    %662 = vmatpush1.msra.mxu0 0.0
    %663 = vmatprep.subr.mxu0 0.0
    %664 = vmatpush1.msra.mxu0 0.0
    %665 = vmatprep.subr.mxu0 0.0
    %666 = vmatpush1.msra.mxu0 0.0
    %667 = vmatprep.subr.mxu0 0.0
    %668 = vmatpush1.msra.mxu0 0.0
    %669 = vmatprep.subr.mxu0 0.0
    %670 = vmatpush1.msra.mxu0 0.0
    %671 = vmatprep.subr.mxu0 0.0
    %672 = vmatpush1.msra.mxu0 0.0
    %673 = vmatprep.subr.mxu0 0.0
    %674 = vmatpush1.msra.mxu0 0.0
    %675 = vmatprep.subr.mxu0 0.0
    %676 = vmatpush1.msra.mxu0 0.0
    %677 = vmatprep.subr.mxu0 0.0
    %678 = vmatpush1.msra.mxu0 0.0
    %679 = vmatprep.subr.mxu0 0.0
    %680 = vmatpush1.msra.mxu0 0.0
    %681 = vmatprep.subr.mxu0 0.0
    %682 = vmatpush1.msra.mxu0 0.0
    %683 = vmatprep.subr.mxu0 0.0
    %684 = vmatpush1.msra.mxu0 0.0
    %685 = vmatprep.subr.mxu0 0.0
    %686 = vmatpush1.msra.mxu0 0.0
    %687 = vmatprep.subr.mxu0 0.0
    %688 = vmatpush1.msra.mxu0 0.0
    %689 = vmatprep.subr.mxu0 0.0
    %690 = vmatpush1.msra.mxu0 0.0
    %691 = vmatprep.subr.mxu0 0.0
    %692 = vmatpush1.msra.mxu0 0.0
    %693 = vmatprep.subr.mxu0 0.0
    %694 = vmatpush1.msra.mxu0 0.0
    %695 = vmatprep.subr.mxu0 0.0
    %696 = vmatpush1.msra.mxu0 0.0
    %697 = vmatprep.subr.mxu0 0.0
    %698 = vmatpush1.msra.mxu0 0.0
    %699 = vmatprep.subr.mxu0 0.0
    %700 = vmatpush1.msra.mxu0 0.0
    %701 = vmatprep.subr.mxu0 0.0
    %702 = vmatpush1.msra.mxu0 0.0
    %703 = vmatprep.subr.mxu0 0.0
    %704 = vmatpush1.msra.mxu0 0.0
    %705 = vmatprep.subr.mxu0 0.0
    %706 = vmatpush1.msra.mxu0 0.0
    %707 = vmatprep.mubr.f32.mxu0 0.0
    %708 = vmatmul.mubr.f32.gmra.mrb[0].mxu0 %v641
    %v709 = vpop.f32.mrb[0].mxu0
    %v710 = vadd.f32 0.0, %v709
    %v711 = vpop.f32.mrb[0].mxu0
    %712 = vdwg.mxu0
    %713 = vst.msk [vmem:[#allocation2] sm:$0xff] %vm392, %v637
    %714 = vst.msk [vmem:[#allocation2 + $0x8] sm:$0xff] %vm392, %v710
    %715 = vrot.lane.b32.xlu0 %v190, 120
    %v716 = vpop.permute.xlu0 %715
    %717 = vrot.lane.b32.xlu0 %v286, 120
    %v718 = vpop.permute.xlu0 %717
    %v719 = vsel %vm392, %v716, 0
    %v721 = vsel %vm392, %v718, 0
    %723 = vmatprep.subr.mxu0 0.0
    %724 = vmatpush1.xpose.msra.mxu0 %v721
    %725 = vmatprep.subr.mxu0 0.0
    %726 = vmatpush1.xpose.msra.mxu0 0.0
    %727 = vmatprep.subr.mxu0 0.0
    %728 = vmatpush1.xpose.msra.mxu0 0.0
    %729 = vmatprep.subr.mxu0 0.0
    %730 = vmatpush1.xpose.msra.mxu0 0.0
    %731 = vmatprep.subr.mxu0 0.0
    %732 = vmatpush1.xpose.msra.mxu0 0.0
    %733 = vmatprep.subr.mxu0 0.0
    %734 = vmatpush1.xpose.msra.mxu0 0.0
    %735 = vmatprep.subr.mxu0 0.0
    %736 = vmatpush1.xpose.msra.mxu0 0.0
    %737 = vmatprep.subr.mxu0 0.0
    %738 = vmatpush1.xpose.msra.mxu0 0.0
    %739 = vmatprep.subr.mxu0 0.0
    %740 = vmatpush1.xpose.msra.mxu0 0.0
    %741 = vmatprep.subr.mxu0 0.0
    %742 = vmatpush1.xpose.msra.mxu0 0.0
    %743 = vmatprep.subr.mxu0 0.0
    %744 = vmatpush1.xpose.msra.mxu0 0.0
    %745 = vmatprep.subr.mxu0 0.0
    %746 = vmatpush1.xpose.msra.mxu0 0.0
    %747 = vmatprep.subr.mxu0 0.0
    %748 = vmatpush1.xpose.msra.mxu0 0.0
    %749 = vmatprep.subr.mxu0 0.0
    %750 = vmatpush1.xpose.msra.mxu0 0.0
    %751 = vmatprep.subr.mxu0 0.0
    %752 = vmatpush1.xpose.msra.mxu0 0.0
    %753 = vmatprep.subr.mxu0 0.0
    %754 = vmatpush1.xpose.msra.mxu0 0.0
    %755 = vmatprep.subr.mxu0 0.0
    %756 = vmatpush1.xpose.msra.mxu0 0.0
    %757 = vmatprep.subr.mxu0 0.0
    %758 = vmatpush1.xpose.msra.mxu0 0.0
    %759 = vmatprep.subr.mxu0 0.0
    %760 = vmatpush1.xpose.msra.mxu0 0.0
    %761 = vmatprep.subr.mxu0 0.0
    %762 = vmatpush1.xpose.msra.mxu0 0.0
    %763 = vmatprep.subr.mxu0 0.0
    %764 = vmatpush1.xpose.msra.mxu0 0.0
    %765 = vmatprep.subr.mxu0 0.0
    %766 = vmatpush1.xpose.msra.mxu0 0.0
    %767 = vmatprep.subr.mxu0 0.0
    %768 = vmatpush1.xpose.msra.mxu0 0.0
    %769 = vmatprep.subr.mxu0 0.0
    %770 = vmatpush1.xpose.msra.mxu0 0.0
    %771 = vmatprep.subr.mxu0 0.0
    %772 = vmatpush1.xpose.msra.mxu0 0.0
    %773 = vmatprep.subr.mxu0 0.0
    %774 = vmatpush1.xpose.msra.mxu0 0.0
    %775 = vmatprep.subr.mxu0 0.0
    %776 = vmatpush1.xpose.msra.mxu0 0.0
    %777 = vmatprep.subr.mxu0 0.0
    %778 = vmatpush1.xpose.msra.mxu0 0.0
    %779 = vmatprep.subr.mxu0 0.0
    %780 = vmatpush1.xpose.msra.mxu0 0.0
    %781 = vmatprep.subr.mxu0 0.0
    %782 = vmatpush1.xpose.msra.mxu0 0.0
    %783 = vmatprep.subr.mxu0 0.0
    %784 = vmatpush1.xpose.msra.mxu0 0.0
    %785 = vmatprep.subr.mxu0 0.0
    %786 = vmatpush1.xpose.msra.mxu0 0.0
    %787 = vmatprep.mubr.f32.mxu0 0.0
    %788 = vmatmul.mubr.f32.gmra.mrb[0].mxu0 %v719
    %v789 = vpop.f32.mrb[0].mxu0
    %v790 = vadd.f32 0.0, %v789
    %v791 = vpop.f32.mrb[0].mxu0
    %792 = vdwg.mxu0
    %793 = vrot.lane.b32.xlu0 %v191, 120
    %v794 = vpop.permute.xlu0 %793
    %795 = vrot.lane.b32.xlu0 %v291, 120
    %v796 = vpop.permute.xlu0 %795
    %v797 = vsel %vm392, %v794, 0
    %v799 = vsel %vm392, %v796, 0
    %801 = vmatprep.subr.mxu0 0.0
    %802 = vmatpush1.xpose.msra.mxu0 %v799
    %803 = vmatprep.subr.mxu0 0.0
    %804 = vmatpush1.xpose.msra.mxu0 0.0
    %805 = vmatprep.subr.mxu0 0.0
    %806 = vmatpush1.xpose.msra.mxu0 0.0
    %807 = vmatprep.subr.mxu0 0.0
    %808 = vmatpush1.xpose.msra.mxu0 0.0
    %809 = vmatprep.subr.mxu0 0.0
    %810 = vmatpush1.xpose.msra.mxu0 0.0
    %811 = vmatprep.subr.mxu0 0.0
    %812 = vmatpush1.xpose.msra.mxu0 0.0
    %813 = vmatprep.subr.mxu0 0.0
    %814 = vmatpush1.xpose.msra.mxu0 0.0
    %815 = vmatprep.subr.mxu0 0.0
    %816 = vmatpush1.xpose.msra.mxu0 0.0
    %817 = vmatprep.subr.mxu0 0.0
    %818 = vmatpush1.xpose.msra.mxu0 0.0
    %819 = vmatprep.subr.mxu0 0.0
    %820 = vmatpush1.xpose.msra.mxu0 0.0
    %821 = vmatprep.subr.mxu0 0.0
    %822 = vmatpush1.xpose.msra.mxu0 0.0
    %823 = vmatprep.subr.mxu0 0.0
    %824 = vmatpush1.xpose.msra.mxu0 0.0
    %825 = vmatprep.subr.mxu0 0.0
    %826 = vmatpush1.xpose.msra.mxu0 0.0
    %827 = vmatprep.subr.mxu0 0.0
    %828 = vmatpush1.xpose.msra.mxu0 0.0
    %829 = vmatprep.subr.mxu0 0.0
    %830 = vmatpush1.xpose.msra.mxu0 0.0
    %831 = vmatprep.subr.mxu0 0.0
    %832 = vmatpush1.xpose.msra.mxu0 0.0
    %833 = vmatprep.subr.mxu0 0.0
    %834 = vmatpush1.xpose.msra.mxu0 0.0
    %835 = vmatprep.subr.mxu0 0.0
    %836 = vmatpush1.xpose.msra.mxu0 0.0
    %837 = vmatprep.subr.mxu0 0.0
    %838 = vmatpush1.xpose.msra.mxu0 0.0
    %839 = vmatprep.subr.mxu0 0.0
    %840 = vmatpush1.xpose.msra.mxu0 0.0
    %841 = vmatprep.subr.mxu0 0.0
    %842 = vmatpush1.xpose.msra.mxu0 0.0
    %843 = vmatprep.subr.mxu0 0.0
    %844 = vmatpush1.xpose.msra.mxu0 0.0
    %845 = vmatprep.subr.mxu0 0.0
    %846 = vmatpush1.xpose.msra.mxu0 0.0
    %847 = vmatprep.subr.mxu0 0.0
    %848 = vmatpush1.xpose.msra.mxu0 0.0
    %849 = vmatprep.subr.mxu0 0.0
    %850 = vmatpush1.xpose.msra.mxu0 0.0
    %851 = vmatprep.subr.mxu0 0.0
    %852 = vmatpush1.xpose.msra.mxu0 0.0
    %853 = vmatprep.subr.mxu0 0.0
    %854 = vmatpush1.xpose.msra.mxu0 0.0
    %855 = vmatprep.subr.mxu0 0.0
    %856 = vmatpush1.xpose.msra.mxu0 0.0
    %857 = vmatprep.subr.mxu0 0.0
    %858 = vmatpush1.xpose.msra.mxu0 0.0
    %859 = vmatprep.subr.mxu0 0.0
    %860 = vmatpush1.xpose.msra.mxu0 0.0
    %861 = vmatprep.subr.mxu0 0.0
    %862 = vmatpush1.xpose.msra.mxu0 0.0
    %863 = vmatprep.subr.mxu0 0.0
    %864 = vmatpush1.xpose.msra.mxu0 0.0
    %865 = vmatprep.mubr.f32.mxu0 0.0
    %866 = vmatmul.mubr.f32.gmra.mrb[0].mxu0 %v797
    %v867 = vpop.f32.mrb[0].mxu0
    %v868 = vadd.f32 0.0, %v867
    %v869 = vpop.f32.mrb[0].mxu0
    %870 = vdwg.mxu0
    %v871 = vsel %vm392, %v790, -inf
    %872 = vmax.xlane.f32.xlu0 %v871
    %v873 = vpop.xlane.xlu0 %872
    %v874 = vsel %vm392, %v868, -inf
    %875 = vmax.xlane.f32.xlu0 %v874
    %v876 = vpop.xlane.xlu0 %875
    %v877 = vsub.f32 %v790, %v873
    %v878 = vsub.f32 %v868, %v876
    %v879 = vmul.f32 %v877, 1.442695
    %v880 = vpow.pop %v879
    %v881 = vmul.f32 %v878, 1.442695
    %v882 = vpow.pop %v881
    %v883 = vsel %vm392, %v880, 0.0
    %884 = vadd.xlane.f32.xlu0 %v883
    %v885 = vpop.xlane.xlu0 %884
    %v886 = vsel %vm392, %v882, 0.0
    %887 = vadd.xlane.f32.xlu0 %v886
    %v888 = vpop.xlane.xlu0 %887
    %v889 = vrcp.pop %v885
    %v890 = vmul.f32 %v880, %v889
    %v891 = vrcp.pop %v888
    %v892 = vmul.f32 %v882, %v891
    %894 = vrot.lane.b32.xlu0 %v384, 120
    %v895 = vpop.permute.xlu0 %894
    %v898 = vsel %vm392, %v890, 0
    %900 = vmatprep.subr.mxu0 0.0
    %901 = vmatpush1.msra.mxu0 %v895
    %902 = vmatprep.subr.mxu0 0.0
    %903 = vmatpush1.msra.mxu0 0.0
    %904 = vmatprep.subr.mxu0 0.0
    %905 = vmatpush1.msra.mxu0 0.0
    %906 = vmatprep.subr.mxu0 0.0
    %907 = vmatpush1.msra.mxu0 0.0
    %908 = vmatprep.subr.mxu0 0.0
    %909 = vmatpush1.msra.mxu0 0.0
    %910 = vmatprep.subr.mxu0 0.0
    %911 = vmatpush1.msra.mxu0 0.0
    %912 = vmatprep.subr.mxu0 0.0
    %913 = vmatpush1.msra.mxu0 0.0
    %914 = vmatprep.subr.mxu0 0.0
    %915 = vmatpush1.msra.mxu0 0.0
    %916 = vmatprep.subr.mxu0 0.0
    %917 = vmatpush1.msra.mxu0 0.0
    %918 = vmatprep.subr.mxu0 0.0
    %919 = vmatpush1.msra.mxu0 0.0
    %920 = vmatprep.subr.mxu0 0.0
    %921 = vmatpush1.msra.mxu0 0.0
    %922 = vmatprep.subr.mxu0 0.0
    %923 = vmatpush1.msra.mxu0 0.0
    %924 = vmatprep.subr.mxu0 0.0
    %925 = vmatpush1.msra.mxu0 0.0
    %926 = vmatprep.subr.mxu0 0.0
    %927 = vmatpush1.msra.mxu0 0.0
    %928 = vmatprep.subr.mxu0 0.0
    %929 = vmatpush1.msra.mxu0 0.0
    %930 = vmatprep.subr.mxu0 0.0
    %931 = vmatpush1.msra.mxu0 0.0
    %932 = vmatprep.subr.mxu0 0.0
    %933 = vmatpush1.msra.mxu0 0.0
    %934 = vmatprep.subr.mxu0 0.0
    %935 = vmatpush1.msra.mxu0 0.0
    %936 = vmatprep.subr.mxu0 0.0
    %937 = vmatpush1.msra.mxu0 0.0
    %938 = vmatprep.subr.mxu0 0.0
    %939 = vmatpush1.msra.mxu0 0.0
    %940 = vmatprep.subr.mxu0 0.0
    %941 = vmatpush1.msra.mxu0 0.0
    %942 = vmatprep.subr.mxu0 0.0
    %943 = vmatpush1.msra.mxu0 0.0
    %944 = vmatprep.subr.mxu0 0.0
    %945 = vmatpush1.msra.mxu0 0.0
    %946 = vmatprep.subr.mxu0 0.0
    %947 = vmatpush1.msra.mxu0 0.0
    %948 = vmatprep.subr.mxu0 0.0
    %949 = vmatpush1.msra.mxu0 0.0
    %950 = vmatprep.subr.mxu0 0.0
    %951 = vmatpush1.msra.mxu0 0.0
    %952 = vmatprep.subr.mxu0 0.0
    %953 = vmatpush1.msra.mxu0 0.0
    %954 = vmatprep.subr.mxu0 0.0
    %955 = vmatpush1.msra.mxu0 0.0
    %956 = vmatprep.subr.mxu0 0.0
    %957 = vmatpush1.msra.mxu0 0.0
    %958 = vmatprep.subr.mxu0 0.0
    %959 = vmatpush1.msra.mxu0 0.0
    %960 = vmatprep.subr.mxu0 0.0
    %961 = vmatpush1.msra.mxu0 0.0
    %962 = vmatprep.subr.mxu0 0.0
    %963 = vmatpush1.msra.mxu0 0.0
    %964 = vmatprep.mubr.f32.mxu0 0.0
    %965 = vmatmul.mubr.f32.gmra.mrb[0].mxu0 %v898
    %v966 = vpop.f32.mrb[0].mxu0
    %v967 = vadd.f32 0.0, %v966
    %v968 = vpop.f32.mrb[0].mxu0
    %969 = vdwg.mxu0
    %971 = vrot.lane.b32.xlu0 %v389, 120
    %v972 = vpop.permute.xlu0 %971
    %v975 = vsel %vm392, %v892, 0
    %977 = vmatprep.subr.mxu0 0.0
    %978 = vmatpush1.msra.mxu0 %v972
    %979 = vmatprep.subr.mxu0 0.0
    %980 = vmatpush1.msra.mxu0 0.0
    %981 = vmatprep.subr.mxu0 0.0
    %982 = vmatpush1.msra.mxu0 0.0
    %983 = vmatprep.subr.mxu0 0.0
    %984 = vmatpush1.msra.mxu0 0.0
    %985 = vmatprep.subr.mxu0 0.0
    %986 = vmatpush1.msra.mxu0 0.0
    %987 = vmatprep.subr.mxu0 0.0
    %988 = vmatpush1.msra.mxu0 0.0
    %989 = vmatprep.subr.mxu0 0.0
    %990 = vmatpush1.msra.mxu0 0.0
    %991 = vmatprep.subr.mxu0 0.0
    %992 = vmatpush1.msra.mxu0 0.0
    %993 = vmatprep.subr.mxu0 0.0
    %994 = vmatpush1.msra.mxu0 0.0
    %995 = vmatprep.subr.mxu0 0.0
    %996 = vmatpush1.msra.mxu0 0.0
    %997 = vmatprep.subr.mxu0 0.0
    %998 = vmatpush1.msra.mxu0 0.0
    %999 = vmatprep.subr.mxu0 0.0
    %1000 = vmatpush1.msra.mxu0 0.0
    %1001 = vmatprep.subr.mxu0 0.0
    %1002 = vmatpush1.msra.mxu0 0.0
    %1003 = vmatprep.subr.mxu0 0.0
    %1004 = vmatpush1.msra.mxu0 0.0
    %1005 = vmatprep.subr.mxu0 0.0
    %1006 = vmatpush1.msra.mxu0 0.0
    %1007 = vmatprep.subr.mxu0 0.0
    %1008 = vmatpush1.msra.mxu0 0.0
    %1009 = vmatprep.subr.mxu0 0.0
    %1010 = vmatpush1.msra.mxu0 0.0
    %1011 = vmatprep.subr.mxu0 0.0
    %1012 = vmatpush1.msra.mxu0 0.0
    %1013 = vmatprep.subr.mxu0 0.0
    %1014 = vmatpush1.msra.mxu0 0.0
    %1015 = vmatprep.subr.mxu0 0.0
    %1016 = vmatpush1.msra.mxu0 0.0
    %1017 = vmatprep.subr.mxu0 0.0
    %1018 = vmatpush1.msra.mxu0 0.0
    %1019 = vmatprep.subr.mxu0 0.0
    %1020 = vmatpush1.msra.mxu0 0.0
    %1021 = vmatprep.subr.mxu0 0.0
    %1022 = vmatpush1.msra.mxu0 0.0
    %1023 = vmatprep.subr.mxu0 0.0
    %1024 = vmatpush1.msra.mxu0 0.0
    %1025 = vmatprep.subr.mxu0 0.0
    %1026 = vmatpush1.msra.mxu0 0.0
    %1027 = vmatprep.subr.mxu0 0.0
    %1028 = vmatpush1.msra.mxu0 0.0
    %1029 = vmatprep.subr.mxu0 0.0
    %1030 = vmatpush1.msra.mxu0 0.0
    %1031 = vmatprep.subr.mxu0 0.0
    %1032 = vmatpush1.msra.mxu0 0.0
    %1033 = vmatprep.subr.mxu0 0.0
    %1034 = vmatpush1.msra.mxu0 0.0
    %1035 = vmatprep.subr.mxu0 0.0
    %1036 = vmatpush1.msra.mxu0 0.0
    %1037 = vmatprep.subr.mxu0 0.0
    %1038 = vmatpush1.msra.mxu0 0.0
    %1039 = vmatprep.subr.mxu0 0.0
    %1040 = vmatpush1.msra.mxu0 0.0
    %1041 = vmatprep.mubr.f32.mxu0 0.0
    %1042 = vmatmul.mubr.f32.gmra.mrb[0].mxu0 %v975
    %v1043 = vpop.f32.mrb[0].mxu0
    %v1044 = vadd.f32 0.0, %v1043
    %v1045 = vpop.f32.mrb[0].mxu0
    %1046 = vdwg.mxu0
    %1049 = vrot.lane.b32.xlu0 %v967, 8
    %v1050 = vpop.permute.xlu0 %1049
    %1051 = vrot.lane.b32.xlu0 %v1044, 8
    %v1052 = vpop.permute.xlu0 %1051
    %vm1055 = vcmask 130112
    %1056 = vst.msk [vmem:[#allocation2] sm:$0xff] %vm1055, %v1050
    %1057 = vst.msk [vmem:[#allocation2 + $0x8] sm:$0xff] %vm1055, %v1052
    %1058 = vrot.lane.b32.xlu0 %v190, 112
    %v1059 = vpop.permute.xlu0 %1058
    %1060 = vrot.lane.b32.xlu0 %v286, 112
    %v1061 = vpop.permute.xlu0 %1060
    %v1062 = vsel %vm392, %v1059, 0
    %v1064 = vsel %vm392, %v1061, 0
    %1066 = vmatprep.subr.mxu0 0.0
    %1067 = vmatpush1.xpose.msra.mxu0 %v1064
    %1068 = vmatprep.subr.mxu0 0.0
    %1069 = vmatpush1.xpose.msra.mxu0 0.0
    %1070 = vmatprep.subr.mxu0 0.0
    %1071 = vmatpush1.xpose.msra.mxu0 0.0
    %1072 = vmatprep.subr.mxu0 0.0
    %1073 = vmatpush1.xpose.msra.mxu0 0.0
    %1074 = vmatprep.subr.mxu0 0.0
    %1075 = vmatpush1.xpose.msra.mxu0 0.0
    %1076 = vmatprep.subr.mxu0 0.0
    %1077 = vmatpush1.xpose.msra.mxu0 0.0
    %1078 = vmatprep.subr.mxu0 0.0
    %1079 = vmatpush1.xpose.msra.mxu0 0.0
    %1080 = vmatprep.subr.mxu0 0.0
    %1081 = vmatpush1.xpose.msra.mxu0 0.0
    %1082 = vmatprep.subr.mxu0 0.0
    %1083 = vmatpush1.xpose.msra.mxu0 0.0
    %1084 = vmatprep.subr.mxu0 0.0
    %1085 = vmatpush1.xpose.msra.mxu0 0.0
    %1086 = vmatprep.subr.mxu0 0.0
    %1087 = vmatpush1.xpose.msra.mxu0 0.0
    %1088 = vmatprep.subr.mxu0 0.0
    %1089 = vmatpush1.xpose.msra.mxu0 0.0
    %1090 = vmatprep.subr.mxu0 0.0
    %1091 = vmatpush1.xpose.msra.mxu0 0.0
    %1092 = vmatprep.subr.mxu0 0.0
    %1093 = vmatpush1.xpose.msra.mxu0 0.0
    %1094 = vmatprep.subr.mxu0 0.0
    %1095 = vmatpush1.xpose.msra.mxu0 0.0
    %1096 = vmatprep.subr.mxu0 0.0
    %1097 = vmatpush1.xpose.msra.mxu0 0.0
    %1098 = vmatprep.subr.mxu0 0.0
    %1099 = vmatpush1.xpose.msra.mxu0 0.0
    %1100 = vmatprep.subr.mxu0 0.0
    %1101 = vmatpush1.xpose.msra.mxu0 0.0
    %1102 = vmatprep.subr.mxu0 0.0
    %1103 = vmatpush1.xpose.msra.mxu0 0.0
    %1104 = vmatprep.subr.mxu0 0.0
    %1105 = vmatpush1.xpose.msra.mxu0 0.0
    %1106 = vmatprep.subr.mxu0 0.0
    %1107 = vmatpush1.xpose.msra.mxu0 0.0
    %1108 = vmatprep.subr.mxu0 0.0
    %1109 = vmatpush1.xpose.msra.mxu0 0.0
    %1110 = vmatprep.subr.mxu0 0.0
    %1111 = vmatpush1.xpose.msra.mxu0 0.0
    %1112 = vmatprep.subr.mxu0 0.0
    %1113 = vmatpush1.xpose.msra.mxu0 0.0
    %1114 = vmatprep.subr.mxu0 0.0
    %1115 = vmatpush1.xpose.msra.mxu0 0.0
    %1116 = vmatprep.subr.mxu0 0.0
    %1117 = vmatpush1.xpose.msra.mxu0 0.0
    %1118 = vmatprep.subr.mxu0 0.0
    %1119 = vmatpush1.xpose.msra.mxu0 0.0
    %1120 = vmatprep.subr.mxu0 0.0
    %1121 = vmatpush1.xpose.msra.mxu0 0.0
    %1122 = vmatprep.subr.mxu0 0.0
    %1123 = vmatpush1.xpose.msra.mxu0 0.0
    %1124 = vmatprep.subr.mxu0 0.0
    %1125 = vmatpush1.xpose.msra.mxu0 0.0
    %1126 = vmatprep.subr.mxu0 0.0
    %1127 = vmatpush1.xpose.msra.mxu0 0.0
    %1128 = vmatprep.subr.mxu0 0.0
    %1129 = vmatpush1.xpose.msra.mxu0 0.0
    %1130 = vmatprep.mubr.f32.mxu0 0.0
    %1131 = vmatmul.mubr.f32.gmra.mrb[0].mxu0 %v1062
    %v1132 = vpop.f32.mrb[0].mxu0
    %v1133 = vadd.f32 0.0, %v1132
    %v1134 = vpop.f32.mrb[0].mxu0
    %1135 = vdwg.mxu0
    %1136 = vrot.lane.b32.xlu0 %v191, 112
    %v1137 = vpop.permute.xlu0 %1136
    %1138 = vrot.lane.b32.xlu0 %v291, 112
    %v1139 = vpop.permute.xlu0 %1138
    %v1140 = vsel %vm392, %v1137, 0
    %v1142 = vsel %vm392, %v1139, 0
    %1144 = vmatprep.subr.mxu0 0.0
    %1145 = vmatpush1.xpose.msra.mxu0 %v1142
    %1146 = vmatprep.subr.mxu0 0.0
    %1147 = vmatpush1.xpose.msra.mxu0 0.0
    %1148 = vmatprep.subr.mxu0 0.0
    %1149 = vmatpush1.xpose.msra.mxu0 0.0
    %1150 = vmatprep.subr.mxu0 0.0
    %1151 = vmatpush1.xpose.msra.mxu0 0.0
    %1152 = vmatprep.subr.mxu0 0.0
    %1153 = vmatpush1.xpose.msra.mxu0 0.0
    %1154 = vmatprep.subr.mxu0 0.0
    %1155 = vmatpush1.xpose.msra.mxu0 0.0
    %1156 = vmatprep.subr.mxu0 0.0
    %1157 = vmatpush1.xpose.msra.mxu0 0.0
    %1158 = vmatprep.subr.mxu0 0.0
    %1159 = vmatpush1.xpose.msra.mxu0 0.0
    %1160 = vmatprep.subr.mxu0 0.0
    %1161 = vmatpush1.xpose.msra.mxu0 0.0
    %1162 = vmatprep.subr.mxu0 0.0
    %1163 = vmatpush1.xpose.msra.mxu0 0.0
    %1164 = vmatprep.subr.mxu0 0.0
    %1165 = vmatpush1.xpose.msra.mxu0 0.0
    %1166 = vmatprep.subr.mxu0 0.0
    %1167 = vmatpush1.xpose.msra.mxu0 0.0
    %1168 = vmatprep.subr.mxu0 0.0
    %1169 = vmatpush1.xpose.msra.mxu0 0.0
    %1170 = vmatprep.subr.mxu0 0.0
    %1171 = vmatpush1.xpose.msra.mxu0 0.0
    %1172 = vmatprep.subr.mxu0 0.0
    %1173 = vmatpush1.xpose.msra.mxu0 0.0
    %1174 = vmatprep.subr.mxu0 0.0
    %1175 = vmatpush1.xpose.msra.mxu0 0.0
    %1176 = vmatprep.subr.mxu0 0.0
    %1177 = vmatpush1.xpose.msra.mxu0 0.0
    %1178 = vmatprep.subr.mxu0 0.0
    %1179 = vmatpush1.xpose.msra.mxu0 0.0
    %1180 = vmatprep.subr.mxu0 0.0
    %1181 = vmatpush1.xpose.msra.mxu0 0.0
    %1182 = vmatprep.subr.mxu0 0.0
    %1183 = vmatpush1.xpose.msra.mxu0 0.0
    %1184 = vmatprep.subr.mxu0 0.0
    %1185 = vmatpush1.xpose.msra.mxu0 0.0
    %1186 = vmatprep.subr.mxu0 0.0
    %1187 = vmatpush1.xpose.msra.mxu0 0.0
    %1188 = vmatprep.subr.mxu0 0.0
    %1189 = vmatpush1.xpose.msra.mxu0 0.0
    %1190 = vmatprep.subr.mxu0 0.0
    %1191 = vmatpush1.xpose.msra.mxu0 0.0
    %1192 = vmatprep.subr.mxu0 0.0
    %1193 = vmatpush1.xpose.msra.mxu0 0.0
    %1194 = vmatprep.subr.mxu0 0.0
    %1195 = vmatpush1.xpose.msra.mxu0 0.0
    %1196 = vmatprep.subr.mxu0 0.0
    %1197 = vmatpush1.xpose.msra.mxu0 0.0
    %1198 = vmatprep.subr.mxu0 0.0
    %1199 = vmatpush1.xpose.msra.mxu0 0.0
    %1200 = vmatprep.subr.mxu0 0.0
    %1201 = vmatpush1.xpose.msra.mxu0 0.0
    %1202 = vmatprep.subr.mxu0 0.0
    %1203 = vmatpush1.xpose.msra.mxu0 0.0
    %1204 = vmatprep.subr.mxu0 0.0
    %1205 = vmatpush1.xpose.msra.mxu0 0.0
    %1206 = vmatprep.subr.mxu0 0.0
    %1207 = vmatpush1.xpose.msra.mxu0 0.0
    %1208 = vmatprep.mubr.f32.mxu0 0.0
    %1209 = vmatmul.mubr.f32.gmra.mrb[0].mxu0 %v1140
    %v1210 = vpop.f32.mrb[0].mxu0
    %v1211 = vadd.f32 0.0, %v1210
    %v1212 = vpop.f32.mrb[0].mxu0
    %1213 = vdwg.mxu0
    %v1214 = vsel %vm392, %v1133, -inf
    %1215 = vmax.xlane.f32.xlu0 %v1214
    %v1216 = vpop.xlane.xlu0 %1215
    %v1217 = vsel %vm392, %v1211, -inf
    %1218 = vmax.xlane.f32.xlu0 %v1217
    %v1219 = vpop.xlane.xlu0 %1218
    %v1220 = vsub.f32 %v1133, %v1216
    %v1221 = vsub.f32 %v1211, %v1219
    %v1222 = vmul.f32 %v1220, 1.442695
    %v1223 = vpow.pop %v1222
    %v1224 = vmul.f32 %v1221, 1.442695
    %v1225 = vpow.pop %v1224
    %v1226 = vsel %vm392, %v1223, 0.0
    %1227 = vadd.xlane.f32.xlu0 %v1226
    %v1228 = vpop.xlane.xlu0 %1227
    %v1229 = vsel %vm392, %v1225, 0.0
    %1230 = vadd.xlane.f32.xlu0 %v1229
    %v1231 = vpop.xlane.xlu0 %1230
    %v1232 = vrcp.pop %v1228
    %v1233 = vmul.f32 %v1223, %v1232
    %v1234 = vrcp.pop %v1231
    %v1235 = vmul.f32 %v1225, %v1234
    %1236 = vrot.lane.b32.xlu0 %v384, 112
    %v1237 = vpop.permute.xlu0 %1236
    %v1240 = vsel %vm392, %v1233, 0
    %1242 = vmatprep.subr.mxu0 0.0
    %1243 = vmatpush1.msra.mxu0 %v1237
    %1244 = vmatprep.subr.mxu0 0.0
    %1245 = vmatpush1.msra.mxu0 0.0
    %1246 = vmatprep.subr.mxu0 0.0
    %1247 = vmatpush1.msra.mxu0 0.0
    %1248 = vmatprep.subr.mxu0 0.0
    %1249 = vmatpush1.msra.mxu0 0.0
    %1250 = vmatprep.subr.mxu0 0.0
    %1251 = vmatpush1.msra.mxu0 0.0
    %1252 = vmatprep.subr.mxu0 0.0
    %1253 = vmatpush1.msra.mxu0 0.0
    %1254 = vmatprep.subr.mxu0 0.0
    %1255 = vmatpush1.msra.mxu0 0.0
    %1256 = vmatprep.subr.mxu0 0.0
    %1257 = vmatpush1.msra.mxu0 0.0
    %1258 = vmatprep.subr.mxu0 0.0
    %1259 = vmatpush1.msra.mxu0 0.0
    %1260 = vmatprep.subr.mxu0 0.0
    %1261 = vmatpush1.msra.mxu0 0.0
    %1262 = vmatprep.subr.mxu0 0.0
    %1263 = vmatpush1.msra.mxu0 0.0
    %1264 = vmatprep.subr.mxu0 0.0
    %1265 = vmatpush1.msra.mxu0 0.0
    %1266 = vmatprep.subr.mxu0 0.0
    %1267 = vmatpush1.msra.mxu0 0.0
    %1268 = vmatprep.subr.mxu0 0.0
    %1269 = vmatpush1.msra.mxu0 0.0
    %1270 = vmatprep.subr.mxu0 0.0
    %1271 = vmatpush1.msra.mxu0 0.0
    %1272 = vmatprep.subr.mxu0 0.0
    %1273 = vmatpush1.msra.mxu0 0.0
    %1274 = vmatprep.subr.mxu0 0.0
    %1275 = vmatpush1.msra.mxu0 0.0
    %1276 = vmatprep.subr.mxu0 0.0
    %1277 = vmatpush1.msra.mxu0 0.0
    %1278 = vmatprep.subr.mxu0 0.0
    %1279 = vmatpush1.msra.mxu0 0.0
    %1280 = vmatprep.subr.mxu0 0.0
    %1281 = vmatpush1.msra.mxu0 0.0
    %1282 = vmatprep.subr.mxu0 0.0
    %1283 = vmatpush1.msra.mxu0 0.0
    %1284 = vmatprep.subr.mxu0 0.0
    %1285 = vmatpush1.msra.mxu0 0.0
    %1286 = vmatprep.subr.mxu0 0.0
    %1287 = vmatpush1.msra.mxu0 0.0
    %1288 = vmatprep.subr.mxu0 0.0
    %1289 = vmatpush1.msra.mxu0 0.0
    %1290 = vmatprep.subr.mxu0 0.0
    %1291 = vmatpush1.msra.mxu0 0.0
    %1292 = vmatprep.subr.mxu0 0.0
    %1293 = vmatpush1.msra.mxu0 0.0
    %1294 = vmatprep.subr.mxu0 0.0
    %1295 = vmatpush1.msra.mxu0 0.0
    %1296 = vmatprep.subr.mxu0 0.0
    %1297 = vmatpush1.msra.mxu0 0.0
    %1298 = vmatprep.subr.mxu0 0.0
    %1299 = vmatpush1.msra.mxu0 0.0
    %1300 = vmatprep.subr.mxu0 0.0
    %1301 = vmatpush1.msra.mxu0 0.0
    %1302 = vmatprep.subr.mxu0 0.0
    %1303 = vmatpush1.msra.mxu0 0.0
    %1304 = vmatprep.subr.mxu0 0.0
    %1305 = vmatpush1.msra.mxu0 0.0
    %1306 = vmatprep.mubr.f32.mxu0 0.0
    %1307 = vmatmul.mubr.f32.gmra.mrb[0].mxu0 %v1240
    %v1308 = vpop.f32.mrb[0].mxu0
    %v1309 = vadd.f32 0.0, %v1308
    %v1310 = vpop.f32.mrb[0].mxu0
    %1311 = vdwg.mxu0
    %1312 = vrot.lane.b32.xlu0 %v389, 112
    %v1313 = vpop.permute.xlu0 %1312
    %v1316 = vsel %vm392, %v1235, 0
    %1318 = vmatprep.subr.mxu0 0.0
    %1319 = vmatpush1.msra.mxu0 %v1313
    %1320 = vmatprep.subr.mxu0 0.0
    %1321 = vmatpush1.msra.mxu0 0.0
    %1322 = vmatprep.subr.mxu0 0.0
    %1323 = vmatpush1.msra.mxu0 0.0
    %1324 = vmatprep.subr.mxu0 0.0
    %1325 = vmatpush1.msra.mxu0 0.0
    %1326 = vmatprep.subr.mxu0 0.0
    %1327 = vmatpush1.msra.mxu0 0.0
    %1328 = vmatprep.subr.mxu0 0.0
    %1329 = vmatpush1.msra.mxu0 0.0
    %1330 = vmatprep.subr.mxu0 0.0
    %1331 = vmatpush1.msra.mxu0 0.0
    %1332 = vmatprep.subr.mxu0 0.0
    %1333 = vmatpush1.msra.mxu0 0.0
    %1334 = vmatprep.subr.mxu0 0.0
    %1335 = vmatpush1.msra.mxu0 0.0
    %1336 = vmatprep.subr.mxu0 0.0
    %1337 = vmatpush1.msra.mxu0 0.0
    %1338 = vmatprep.subr.mxu0 0.0
    %1339 = vmatpush1.msra.mxu0 0.0
    %1340 = vmatprep.subr.mxu0 0.0
    %1341 = vmatpush1.msra.mxu0 0.0
    %1342 = vmatprep.subr.mxu0 0.0
    %1343 = vmatpush1.msra.mxu0 0.0
    %1344 = vmatprep.subr.mxu0 0.0
    %1345 = vmatpush1.msra.mxu0 0.0
    %1346 = vmatprep.subr.mxu0 0.0
    %1347 = vmatpush1.msra.mxu0 0.0
    %1348 = vmatprep.subr.mxu0 0.0
    %1349 = vmatpush1.msra.mxu0 0.0
    %1350 = vmatprep.subr.mxu0 0.0
    %1351 = vmatpush1.msra.mxu0 0.0
    %1352 = vmatprep.subr.mxu0 0.0
    %1353 = vmatpush1.msra.mxu0 0.0
    %1354 = vmatprep.subr.mxu0 0.0
    %1355 = vmatpush1.msra.mxu0 0.0
    %1356 = vmatprep.subr.mxu0 0.0
    %1357 = vmatpush1.msra.mxu0 0.0
    %1358 = vmatprep.subr.mxu0 0.0
    %1359 = vmatpush1.msra.mxu0 0.0
    %1360 = vmatprep.subr.mxu0 0.0
    %1361 = vmatpush1.msra.mxu0 0.0
    %1362 = vmatprep.subr.mxu0 0.0
    %1363 = vmatpush1.msra.mxu0 0.0
    %1364 = vmatprep.subr.mxu0 0.0
    %1365 = vmatpush1.msra.mxu0 0.0
    %1366 = vmatprep.subr.mxu0 0.0
    %1367 = vmatpush1.msra.mxu0 0.0
    %1368 = vmatprep.subr.mxu0 0.0
    %1369 = vmatpush1.msra.mxu0 0.0
    %1370 = vmatprep.subr.mxu0 0.0
    %1371 = vmatpush1.msra.mxu0 0.0
    %1372 = vmatprep.subr.mxu0 0.0
    %1373 = vmatpush1.msra.mxu0 0.0
    %1374 = vmatprep.subr.mxu0 0.0
    %1375 = vmatpush1.msra.mxu0 0.0
    %1376 = vmatprep.subr.mxu0 0.0
    %1377 = vmatpush1.msra.mxu0 0.0
    %1378 = vmatprep.subr.mxu0 0.0
    %1379 = vmatpush1.msra.mxu0 0.0
    %1380 = vmatprep.subr.mxu0 0.0
    %1381 = vmatpush1.msra.mxu0 0.0
    %1382 = vmatprep.mubr.f32.mxu0 0.0
    %1383 = vmatmul.mubr.f32.gmra.mrb[0].mxu0 %v1316
    %v1384 = vpop.f32.mrb[0].mxu0
    %v1385 = vadd.f32 0.0, %v1384
    %v1386 = vpop.f32.mrb[0].mxu0
    %1387 = vdwg.mxu0
    %1390 = vrot.lane.b32.xlu0 %v1309, 16
    %v1391 = vpop.permute.xlu0 %1390
    %1392 = vrot.lane.b32.xlu0 %v1385, 16
    %v1393 = vpop.permute.xlu0 %1392
    %vm1396 = vcmask 195712
    %1397 = vst.msk [vmem:[#allocation2] sm:$0xff] %vm1396, %v1391
    %1398 = vst.msk [vmem:[#allocation2 + $0x8] sm:$0xff] %vm1396, %v1393
    %1399 = vrot.lane.b32.xlu0 %v190, 104
    %v1400 = vpop.permute.xlu0 %1399
    %1401 = vrot.lane.b32.xlu0 %v286, 104
    %v1402 = vpop.permute.xlu0 %1401
    %v1403 = vsel %vm392, %v1400, 0
    %v1405 = vsel %vm392, %v1402, 0
    %1407 = vmatprep.subr.mxu0 0.0
    %1408 = vmatpush1.xpose.msra.mxu0 %v1405
    %1409 = vmatprep.subr.mxu0 0.0
    %1410 = vmatpush1.xpose.msra.mxu0 0.0
    %1411 = vmatprep.subr.mxu0 0.0
    %1412 = vmatpush1.xpose.msra.mxu0 0.0
    %1413 = vmatprep.subr.mxu0 0.0
    %1414 = vmatpush1.xpose.msra.mxu0 0.0
    %1415 = vmatprep.subr.mxu0 0.0
    %1416 = vmatpush1.xpose.msra.mxu0 0.0
    %1417 = vmatprep.subr.mxu0 0.0
    %1418 = vmatpush1.xpose.msra.mxu0 0.0
    %1419 = vmatprep.subr.mxu0 0.0
    %1420 = vmatpush1.xpose.msra.mxu0 0.0
    %1421 = vmatprep.subr.mxu0 0.0
    %1422 = vmatpush1.xpose.msra.mxu0 0.0
    %1423 = vmatprep.subr.mxu0 0.0
    %1424 = vmatpush1.xpose.msra.mxu0 0.0
    %1425 = vmatprep.subr.mxu0 0.0
    %1426 = vmatpush1.xpose.msra.mxu0 0.0
    %1427 = vmatprep.subr.mxu0 0.0
    %1428 = vmatpush1.xpose.msra.mxu0 0.0
    %1429 = vmatprep.subr.mxu0 0.0
    %1430 = vmatpush1.xpose.msra.mxu0 0.0
    %1431 = vmatprep.subr.mxu0 0.0
    %1432 = vmatpush1.xpose.msra.mxu0 0.0
    %1433 = vmatprep.subr.mxu0 0.0
    %1434 = vmatpush1.xpose.msra.mxu0 0.0
    %1435 = vmatprep.subr.mxu0 0.0
    %1436 = vmatpush1.xpose.msra.mxu0 0.0
    %1437 = vmatprep.subr.mxu0 0.0
    %1438 = vmatpush1.xpose.msra.mxu0 0.0
    %1439 = vmatprep.subr.mxu0 0.0
    %1440 = vmatpush1.xpose.msra.mxu0 0.0
    %1441 = vmatprep.subr.mxu0 0.0
    %1442 = vmatpush1.xpose.msra.mxu0 0.0
    %1443 = vmatprep.subr.mxu0 0.0
    %1444 = vmatpush1.xpose.msra.mxu0 0.0
    %1445 = vmatprep.subr.mxu0 0.0
    %1446 = vmatpush1.xpose.msra.mxu0 0.0
    %1447 = vmatprep.subr.mxu0 0.0
    %1448 = vmatpush1.xpose.msra.mxu0 0.0
    %1449 = vmatprep.subr.mxu0 0.0
    %1450 = vmatpush1.xpose.msra.mxu0 0.0
    %1451 = vmatprep.subr.mxu0 0.0
    %1452 = vmatpush1.xpose.msra.mxu0 0.0
    %1453 = vmatprep.subr.mxu0 0.0
    %1454 = vmatpush1.xpose.msra.mxu0 0.0
    %1455 = vmatprep.subr.mxu0 0.0
    %1456 = vmatpush1.xpose.msra.mxu0 0.0
    %1457 = vmatprep.subr.mxu0 0.0
    %1458 = vmatpush1.xpose.msra.mxu0 0.0
    %1459 = vmatprep.subr.mxu0 0.0
    %1460 = vmatpush1.xpose.msra.mxu0 0.0
    %1461 = vmatprep.subr.mxu0 0.0
    %1462 = vmatpush1.xpose.msra.mxu0 0.0
    %1463 = vmatprep.subr.mxu0 0.0
    %1464 = vmatpush1.xpose.msra.mxu0 0.0
    %1465 = vmatprep.subr.mxu0 0.0
    %1466 = vmatpush1.xpose.msra.mxu0 0.0
    %1467 = vmatprep.subr.mxu0 0.0
    %1468 = vmatpush1.xpose.msra.mxu0 0.0
    %1469 = vmatprep.subr.mxu0 0.0
    %1470 = vmatpush1.xpose.msra.mxu0 0.0
    %1471 = vmatprep.mubr.f32.mxu0 0.0
    %1472 = vmatmul.mubr.f32.gmra.mrb[0].mxu0 %v1403
    %v1473 = vpop.f32.mrb[0].mxu0
    %v1474 = vadd.f32 0.0, %v1473
    %v1475 = vpop.f32.mrb[0].mxu0
    %1476 = vdwg.mxu0
    %1477 = vrot.lane.b32.xlu0 %v191, 104
    %v1478 = vpop.permute.xlu0 %1477
    %1479 = vrot.lane.b32.xlu0 %v291, 104
    %v1480 = vpop.permute.xlu0 %1479
    %v1481 = vsel %vm392, %v1478, 0
    %v1483 = vsel %vm392, %v1480, 0
    %1485 = vmatprep.subr.mxu0 0.0
    %1486 = vmatpush1.xpose.msra.mxu0 %v1483
    %1487 = vmatprep.subr.mxu0 0.0
    %1488 = vmatpush1.xpose.msra.mxu0 0.0
    %1489 = vmatprep.subr.mxu0 0.0
    %1490 = vmatpush1.xpose.msra.mxu0 0.0
    %1491 = vmatprep.subr.mxu0 0.0
    %1492 = vmatpush1.xpose.msra.mxu0 0.0
    %1493 = vmatprep.subr.mxu0 0.0
    %1494 = vmatpush1.xpose.msra.mxu0 0.0
    %1495 = vmatprep.subr.mxu0 0.0
    %1496 = vmatpush1.xpose.msra.mxu0 0.0
    %1497 = vmatprep.subr.mxu0 0.0
    %1498 = vmatpush1.xpose.msra.mxu0 0.0
    %1499 = vmatprep.subr.mxu0 0.0
    %1500 = vmatpush1.xpose.msra.mxu0 0.0
    %1501 = vmatprep.subr.mxu0 0.0
    %1502 = vmatpush1.xpose.msra.mxu0 0.0
    %1503 = vmatprep.subr.mxu0 0.0
    %1504 = vmatpush1.xpose.msra.mxu0 0.0
    %1505 = vmatprep.subr.mxu0 0.0
    %1506 = vmatpush1.xpose.msra.mxu0 0.0
    %1507 = vmatprep.subr.mxu0 0.0
    %1508 = vmatpush1.xpose.msra.mxu0 0.0
    %1509 = vmatprep.subr.mxu0 0.0
    %1510 = vmatpush1.xpose.msra.mxu0 0.0
    %1511 = vmatprep.subr.mxu0 0.0
    %1512 = vmatpush1.xpose.msra.mxu0 0.0
    %1513 = vmatprep.subr.mxu0 0.0
    %1514 = vmatpush1.xpose.msra.mxu0 0.0
    %1515 = vmatprep.subr.mxu0 0.0
    %1516 = vmatpush1.xpose.msra.mxu0 0.0
    %1517 = vmatprep.subr.mxu0 0.0
    %1518 = vmatpush1.xpose.msra.mxu0 0.0
    %1519 = vmatprep.subr.mxu0 0.0
    %1520 = vmatpush1.xpose.msra.mxu0 0.0
    %1521 = vmatprep.subr.mxu0 0.0
    %1522 = vmatpush1.xpose.msra.mxu0 0.0
    %1523 = vmatprep.subr.mxu0 0.0
    %1524 = vmatpush1.xpose.msra.mxu0 0.0
    %1525 = vmatprep.subr.mxu0 0.0
    %1526 = vmatpush1.xpose.msra.mxu0 0.0
    %1527 = vmatprep.subr.mxu0 0.0
    %1528 = vmatpush1.xpose.msra.mxu0 0.0
    %1529 = vmatprep.subr.mxu0 0.0
    %1530 = vmatpush1.xpose.msra.mxu0 0.0
    %1531 = vmatprep.subr.mxu0 0.0
    %1532 = vmatpush1.xpose.msra.mxu0 0.0
    %1533 = vmatprep.subr.mxu0 0.0
    %1534 = vmatpush1.xpose.msra.mxu0 0.0
    %1535 = vmatprep.subr.mxu0 0.0
    %1536 = vmatpush1.xpose.msra.mxu0 0.0
    %1537 = vmatprep.subr.mxu0 0.0
    %1538 = vmatpush1.xpose.msra.mxu0 0.0
    %1539 = vmatprep.subr.mxu0 0.0
    %1540 = vmatpush1.xpose.msra.mxu0 0.0
    %1541 = vmatprep.subr.mxu0 0.0
    %1542 = vmatpush1.xpose.msra.mxu0 0.0
    %1543 = vmatprep.subr.mxu0 0.0
    %1544 = vmatpush1.xpose.msra.mxu0 0.0
    %1545 = vmatprep.subr.mxu0 0.0
    %1546 = vmatpush1.xpose.msra.mxu0 0.0
    %1547 = vmatprep.subr.mxu0 0.0
    %1548 = vmatpush1.xpose.msra.mxu0 0.0
    %1549 = vmatprep.mubr.f32.mxu0 0.0
    %1550 = vmatmul.mubr.f32.gmra.mrb[0].mxu0 %v1481
    %v1551 = vpop.f32.mrb[0].mxu0
    %v1552 = vadd.f32 0.0, %v1551
    %v1553 = vpop.f32.mrb[0].mxu0
    %1554 = vdwg.mxu0
    %v1555 = vsel %vm392, %v1474, -inf
    %1556 = vmax.xlane.f32.xlu0 %v1555
    %v1557 = vpop.xlane.xlu0 %1556
    %v1558 = vsel %vm392, %v1552, -inf
    %1559 = vmax.xlane.f32.xlu0 %v1558
    %v1560 = vpop.xlane.xlu0 %1559
    %v1561 = vsub.f32 %v1474, %v1557
    %v1562 = vsub.f32 %v1552, %v1560
    %v1563 = vmul.f32 %v1561, 1.442695
    %v1564 = vpow.pop %v1563
    %v1565 = vmul.f32 %v1562, 1.442695
    %v1566 = vpow.pop %v1565
    %v1567 = vsel %vm392, %v1564, 0.0
    %1568 = vadd.xlane.f32.xlu0 %v1567
    %v1569 = vpop.xlane.xlu0 %1568
    %v1570 = vsel %vm392, %v1566, 0.0
    %1571 = vadd.xlane.f32.xlu0 %v1570
    %v1572 = vpop.xlane.xlu0 %1571
    %v1573 = vrcp.pop %v1569
    %v1574 = vmul.f32 %v1564, %v1573
    %v1575 = vrcp.pop %v1572
    %v1576 = vmul.f32 %v1566, %v1575
    %1577 = vrot.lane.b32.xlu0 %v384, 104
    %v1578 = vpop.permute.xlu0 %1577
    %v1581 = vsel %vm392, %v1574, 0
    %1583 = vmatprep.subr.mxu0 0.0
    %1584 = vmatpush1.msra.mxu0 %v1578
    %1585 = vmatprep.subr.mxu0 0.0
    %1586 = vmatpush1.msra.mxu0 0.0
    %1587 = vmatprep.subr.mxu0 0.0
    %1588 = vmatpush1.msra.mxu0 0.0
    %1589 = vmatprep.subr.mxu0 0.0
    %1590 = vmatpush1.msra.mxu0 0.0
    %1591 = vmatprep.subr.mxu0 0.0
    %1592 = vmatpush1.msra.mxu0 0.0
    %1593 = vmatprep.subr.mxu0 0.0
    %1594 = vmatpush1.msra.mxu0 0.0
    %1595 = vmatprep.subr.mxu0 0.0
    %1596 = vmatpush1.msra.mxu0 0.0
    %1597 = vmatprep.subr.mxu0 0.0
    %1598 = vmatpush1.msra.mxu0 0.0
    %1599 = vmatprep.subr.mxu0 0.0
    %1600 = vmatpush1.msra.mxu0 0.0
    %1601 = vmatprep.subr.mxu0 0.0
    %1602 = vmatpush1.msra.mxu0 0.0
    %1603 = vmatprep.subr.mxu0 0.0
    %1604 = vmatpush1.msra.mxu0 0.0
    %1605 = vmatprep.subr.mxu0 0.0
    %1606 = vmatpush1.msra.mxu0 0.0
    %1607 = vmatprep.subr.mxu0 0.0
    %1608 = vmatpush1.msra.mxu0 0.0
    %1609 = vmatprep.subr.mxu0 0.0
    %1610 = vmatpush1.msra.mxu0 0.0
    %1611 = vmatprep.subr.mxu0 0.0
    %1612 = vmatpush1.msra.mxu0 0.0
    %1613 = vmatprep.subr.mxu0 0.0
    %1614 = vmatpush1.msra.mxu0 0.0
    %1615 = vmatprep.subr.mxu0 0.0
    %1616 = vmatpush1.msra.mxu0 0.0
    %1617 = vmatprep.subr.mxu0 0.0
    %1618 = vmatpush1.msra.mxu0 0.0
    %1619 = vmatprep.subr.mxu0 0.0
    %1620 = vmatpush1.msra.mxu0 0.0
    %1621 = vmatprep.subr.mxu0 0.0
    %1622 = vmatpush1.msra.mxu0 0.0
    %1623 = vmatprep.subr.mxu0 0.0
    %1624 = vmatpush1.msra.mxu0 0.0
    %1625 = vmatprep.subr.mxu0 0.0
    %1626 = vmatpush1.msra.mxu0 0.0
    %1627 = vmatprep.subr.mxu0 0.0
    %1628 = vmatpush1.msra.mxu0 0.0
    %1629 = vmatprep.subr.mxu0 0.0
    %1630 = vmatpush1.msra.mxu0 0.0
    %1631 = vmatprep.subr.mxu0 0.0
    %1632 = vmatpush1.msra.mxu0 0.0
    %1633 = vmatprep.subr.mxu0 0.0
    %1634 = vmatpush1.msra.mxu0 0.0
    %1635 = vmatprep.subr.mxu0 0.0
    %1636 = vmatpush1.msra.mxu0 0.0
    %1637 = vmatprep.subr.mxu0 0.0
    %1638 = vmatpush1.msra.mxu0 0.0
    %1639 = vmatprep.subr.mxu0 0.0
    %1640 = vmatpush1.msra.mxu0 0.0
    %1641 = vmatprep.subr.mxu0 0.0
    %1642 = vmatpush1.msra.mxu0 0.0
    %1643 = vmatprep.subr.mxu0 0.0
    %1644 = vmatpush1.msra.mxu0 0.0
    %1645 = vmatprep.subr.mxu0 0.0
    %1646 = vmatpush1.msra.mxu0 0.0
    %1647 = vmatprep.mubr.f32.mxu0 0.0
    %1648 = vmatmul.mubr.f32.gmra.mrb[0].mxu0 %v1581
    %v1649 = vpop.f32.mrb[0].mxu0
    %v1650 = vadd.f32 0.0, %v1649
    %v1651 = vpop.f32.mrb[0].mxu0
    %1652 = vdwg.mxu0
    %1653 = vrot.lane.b32.xlu0 %v389, 104
    %v1654 = vpop.permute.xlu0 %1653
    %v1657 = vsel %vm392, %v1576, 0
    %1659 = vmatprep.subr.mxu0 0.0
    %1660 = vmatpush1.msra.mxu0 %v1654
    %1661 = vmatprep.subr.mxu0 0.0
    %1662 = vmatpush1.msra.mxu0 0.0
    %1663 = vmatprep.subr.mxu0 0.0
    %1664 = vmatpush1.msra.mxu0 0.0
    %1665 = vmatprep.subr.mxu0 0.0
    %1666 = vmatpush1.msra.mxu0 0.0
    %1667 = vmatprep.subr.mxu0 0.0
    %1668 = vmatpush1.msra.mxu0 0.0
    %1669 = vmatprep.subr.mxu0 0.0
    %1670 = vmatpush1.msra.mxu0 0.0
    %1671 = vmatprep.subr.mxu0 0.0
    %1672 = vmatpush1.msra.mxu0 0.0
    %1673 = vmatprep.subr.mxu0 0.0
    %1674 = vmatpush1.msra.mxu0 0.0
    %1675 = vmatprep.subr.mxu0 0.0
    %1676 = vmatpush1.msra.mxu0 0.0
    %1677 = vmatprep.subr.mxu0 0.0
    %1678 = vmatpush1.msra.mxu0 0.0
    %1679 = vmatprep.subr.mxu0 0.0
    %1680 = vmatpush1.msra.mxu0 0.0
    %1681 = vmatprep.subr.mxu0 0.0
    %1682 = vmatpush1.msra.mxu0 0.0
    %1683 = vmatprep.subr.mxu0 0.0
    %1684 = vmatpush1.msra.mxu0 0.0
    %1685 = vmatprep.subr.mxu0 0.0
    %1686 = vmatpush1.msra.mxu0 0.0
    %1687 = vmatprep.subr.mxu0 0.0
    %1688 = vmatpush1.msra.mxu0 0.0
    %1689 = vmatprep.subr.mxu0 0.0
    %1690 = vmatpush1.msra.mxu0 0.0
    %1691 = vmatprep.subr.mxu0 0.0
    %1692 = vmatpush1.msra.mxu0 0.0
    %1693 = vmatprep.subr.mxu0 0.0
    %1694 = vmatpush1.msra.mxu0 0.0
    %1695 = vmatprep.subr.mxu0 0.0
    %1696 = vmatpush1.msra.mxu0 0.0
    %1697 = vmatprep.subr.mxu0 0.0
    %1698 = vmatpush1.msra.mxu0 0.0
    %1699 = vmatprep.subr.mxu0 0.0
    %1700 = vmatpush1.msra.mxu0 0.0
    %1701 = vmatprep.subr.mxu0 0.0
    %1702 = vmatpush1.msra.mxu0 0.0
    %1703 = vmatprep.subr.mxu0 0.0
    %1704 = vmatpush1.msra.mxu0 0.0
    %1705 = vmatprep.subr.mxu0 0.0
    %1706 = vmatpush1.msra.mxu0 0.0
    %1707 = vmatprep.subr.mxu0 0.0
    %1708 = vmatpush1.msra.mxu0 0.0
    %1709 = vmatprep.subr.mxu0 0.0
    %1710 = vmatpush1.msra.mxu0 0.0
    %1711 = vmatprep.subr.mxu0 0.0
    %1712 = vmatpush1.msra.mxu0 0.0
    %1713 = vmatprep.subr.mxu0 0.0
    %1714 = vmatpush1.msra.mxu0 0.0
    %1715 = vmatprep.subr.mxu0 0.0
    %1716 = vmatpush1.msra.mxu0 0.0
    %1717 = vmatprep.subr.mxu0 0.0
    %1718 = vmatpush1.msra.mxu0 0.0
    %1719 = vmatprep.subr.mxu0 0.0
    %1720 = vmatpush1.msra.mxu0 0.0
    %1721 = vmatprep.subr.mxu0 0.0
    %1722 = vmatpush1.msra.mxu0 0.0
    %1723 = vmatprep.mubr.f32.mxu0 0.0
    %1724 = vmatmul.mubr.f32.gmra.mrb[0].mxu0 %v1657
    %v1725 = vpop.f32.mrb[0].mxu0
    %v1726 = vadd.f32 0.0, %v1725
    %v1727 = vpop.f32.mrb[0].mxu0
    %1728 = vdwg.mxu0
    %1731 = vrot.lane.b32.xlu0 %v1650, 24
    %v1732 = vpop.permute.xlu0 %1731
    %1733 = vrot.lane.b32.xlu0 %v1726, 24
    %v1734 = vpop.permute.xlu0 %1733
    %vm1737 = vcmask 261312
    %1738 = vst.msk [vmem:[#allocation2] sm:$0xff] %vm1737, %v1732
    %1739 = vst.msk [vmem:[#allocation2 + $0x8] sm:$0xff] %vm1737, %v1734
    %v1740 = vld [vmem:[#allocation2] sm:$0xff]
    %v1741 = vld [vmem:[#allocation2 + $0x8] sm:$0xff]
    %v1742 = vld [vmem:[#allocation11] sm:$0xff]
    %v1743 = vld [vmem:[#allocation11 + $0x8] sm:$0xff]
    %v1744 = vld [vmem:[#allocation11 + $0x10] sm:$0xff]
    %v1745 = vld [vmem:[#allocation11 + $0x18] sm:$0xff]
    %v1746 = vld [vmem:[%s6] sm:$0x1]
    %v1748 = vlaneseq
    %v1749 = vshrl.u32 %v1748, 7
    %v1750 = vsub.s32 0, %v1749
    %v1751 = vrot.slane %v1746, %v1750
    %v1754 = vsel %vm108, %v1740, 0
    %v1757 = vsel %vm108, %v1741, 0
    %1759 = vmatprep.subr.mxu0 0.0
    %1760 = vmatpush1.msra.mxu0 %v1742
    %1761 = vmatprep.subr.mxu0 0.0
    %1762 = vmatpush1.msra.mxu0 %v1743
    %1763 = vmatprep.subr.mxu0 0.0
    %1764 = vmatpush1.msra.mxu0 %v1744
    %1765 = vmatprep.subr.mxu0 0.0
    %1766 = vmatpush1.msra.mxu0 %v1745
    %1767 = vmatprep.subr.mxu0 0.0
    %1768 = vmatpush1.msra.mxu0 0.0
    %1769 = vmatprep.subr.mxu0 0.0
    %1770 = vmatpush1.msra.mxu0 0.0
    %1771 = vmatprep.subr.mxu0 0.0
    %1772 = vmatpush1.msra.mxu0 0.0
    %1773 = vmatprep.subr.mxu0 0.0
    %1774 = vmatpush1.msra.mxu0 0.0
    %1775 = vmatprep.subr.mxu0 0.0
    %1776 = vmatpush1.msra.mxu0 0.0
    %1777 = vmatprep.subr.mxu0 0.0
    %1778 = vmatpush1.msra.mxu0 0.0
    %1779 = vmatprep.subr.mxu0 0.0
    %1780 = vmatpush1.msra.mxu0 0.0
    %1781 = vmatprep.subr.mxu0 0.0
    %1782 = vmatpush1.msra.mxu0 0.0
    %1783 = vmatprep.subr.mxu0 0.0
    %1784 = vmatpush1.msra.mxu0 0.0
    %1785 = vmatprep.subr.mxu0 0.0
    %1786 = vmatpush1.msra.mxu0 0.0
    %1787 = vmatprep.subr.mxu0 0.0
    %1788 = vmatpush1.msra.mxu0 0.0
    %1789 = vmatprep.subr.mxu0 0.0
    %1790 = vmatpush1.msra.mxu0 0.0
    %1791 = vmatprep.subr.mxu0 0.0
    %1792 = vmatpush1.msra.mxu0 0.0
    %1793 = vmatprep.subr.mxu0 0.0
    %1794 = vmatpush1.msra.mxu0 0.0
    %1795 = vmatprep.subr.mxu0 0.0
    %1796 = vmatpush1.msra.mxu0 0.0
    %1797 = vmatprep.subr.mxu0 0.0
    %1798 = vmatpush1.msra.mxu0 0.0
    %1799 = vmatprep.subr.mxu0 0.0
    %1800 = vmatpush1.msra.mxu0 0.0
    %1801 = vmatprep.subr.mxu0 0.0
    %1802 = vmatpush1.msra.mxu0 0.0
    %1803 = vmatprep.subr.mxu0 0.0
    %1804 = vmatpush1.msra.mxu0 0.0
    %1805 = vmatprep.subr.mxu0 0.0
    %1806 = vmatpush1.msra.mxu0 0.0
    %1807 = vmatprep.subr.mxu0 0.0
    %1808 = vmatpush1.msra.mxu0 0.0
    %1809 = vmatprep.subr.mxu0 0.0
    %1810 = vmatpush1.msra.mxu0 0.0
    %1811 = vmatprep.subr.mxu0 0.0
    %1812 = vmatpush1.msra.mxu0 0.0
    %1813 = vmatprep.subr.mxu0 0.0
    %1814 = vmatpush1.msra.mxu0 0.0
    %1815 = vmatprep.subr.mxu0 0.0
    %1816 = vmatpush1.msra.mxu0 0.0
    %1817 = vmatprep.subr.mxu0 0.0
    %1818 = vmatpush1.msra.mxu0 0.0
    %1819 = vmatprep.subr.mxu0 0.0
    %1820 = vmatpush1.msra.mxu0 0.0
    %1821 = vmatprep.subr.mxu0 0.0
    %1822 = vmatpush1.msra.mxu0 0.0
    %1823 = vmatprep.mubr.f32.mxu0 0.0
    %1824 = vmatmul.mubr.f32.gmra.mrb[0].mxu0 %v1754
    %v1825 = vpop.f32.mrb[0].mxu0
    %v1826 = vadd.f32 %v1751, %v1825
    %v1827 = vpop.f32.mrb[0].mxu0
    %1828 = vmatprep.mubr.f32.mxu0 0.0
    %1829 = vmatmul.mubr.f32.gmra.mrb[0].mxu0 %v1757
    %v1830 = vpop.f32.mrb[0].mxu0
    %v1831 = vadd.f32 %v1751, %v1830
    %v1832 = vpop.f32.mrb[0].mxu0
    %1833 = vdwg.mxu0
    %1834 = vst.msk [vmem:[#allocation12] sm:$0xff] %vm108, %v1826
    %1835 = vst.msk [vmem:[#allocation12 + $0x8] sm:$0xff] %vm108, %v1831
    // Predicated region
    $region50: #{tpu_custom_call.1} parent=1 // pred_check
      _
    $region51: #{tpu_custom_call.1} parent=1 // pred_check_branch
      %1837 = sbr.rel (0) target = $region53
    $region52: #{tpu_custom_call.1} parent=1 // pred_region
      %s1839 = ssub.s32 256, 256
      %1840 = vsyncadd [#allocation5], %s1839
      %s1841 = sshll.u32 [#allocation12], 4
      %s1842 = int_to_ptr.vmem [resolvable:$true] %s1841
      %1847 = dma.vmem_to_hbm [thread:$0]  %s1842, 256, %s7, [#allocation5], 128, 128, 8
    $region53: #{tpu_custom_call.1} parent=1 // pred_fallthru
      _
    // Predicated region
    $region54: #{tpu_custom_call.1} parent=1 // pred_check
      _
    $region55: #{tpu_custom_call.1} parent=1 // pred_check_branch
      %1849 = sbr.rel (0) target = $region57
    $region56: #{tpu_custom_call.1} parent=1 // pred_region
      %1850 = dma.done [#allocation5], 256
    $region57: #{tpu_custom_call.1} parent=1 // pred_fallthru
      _
    %1851 = vsyncpa [#allocation4], 1
    %1852 = vsyncpa [#allocation7], 1
    %1853 = vsyncpa [#allocation10], 1
    %1854 = vsyncpa [#allocation5], 1

</llo_original>
